<compile_context>
chip_gen: v6e
topology: v6e:2x2x1
jax: 0.10.0
libtpu: 0.0.40
codegen_flags: <defaults>
</compile_context>

<pallas_src>
import jax
import jax.numpy as jnp
from jax.experimental import pallas as pl
from jax.experimental.pallas import tpu as pltpu

# Fixed architecture constants (from the PyTorch module).
K = 5              # conv kernel size (both convs)
H1 = 12            # conv1 output spatial (28 -> 12)
H2 = 4             # conv2 output spatial (12 -> 4)
C1 = 10            # conv1 out channels
C2 = 20            # conv2 out channels
F1 = 80            # fc1 out features
F2 = 10            # fc2 out features (logits)
NPOS = H2 * H2     # 16 conv2 output positions
NTAP = K * K       # 25 kernel taps per conv
KPAD = 32          # conv1 taps 25 -> 32 (tile-friendly sub-block)
CPACK = 256        # packed conv2 contraction: 25 taps * 10 cin = 250 -> 256
C2PAD = 32         # conv2 channels 20 -> 32 (fc1 contraction)
LANES = 128        # lane-dense channel/feature width


# ----------------------------------------------------------------------------
# The single fused kernel: whole forward pass on VMEM-resident operands.
# ----------------------------------------------------------------------------
def _fused_net_kernel(p_ref, w1_ref, b1_ref, w2_ref, b2_ref,
                      w3_ref, b3_ref, w4_ref, b4_ref, o_ref):
    """p_ref : (NPOS*bp, 800) bf16  double-im2col patches, rows (pos, batch),
                                    cols (conv2 tap)*32 + (conv1 tap)
       w1    : (800, 256)     bf16  block-diagonal conv1 (one 32x10 block/tap)
       w2    : (256, 128)     bf16  conv2, rows = packed (tap, cin)
       w3    : (16, 32, 128)  bf16  fc1, one (cin, feat) slab per position
       w4    : (128, 128)     bf16  fc2
       b*    : (1, lanes)     f32   lane-padded / tap-tiled biases
       o_ref : (bp, 128)      f32   lane-dense logits (first 10 lanes valid)"""
    bf16 = jnp.bfloat16
    rows = p_ref.shape[0]
    bp = rows // NPOS

    # ---- conv1 + ReLU: one matmul; lane t*10+c of h1 = conv1 channel c at the
    #      input window feeding conv2 tap t of this output position.
    h1 = jnp.dot(p_ref[...], w1_ref[...], preferred_element_type=jnp.float32)
    h1 = jnp.maximum(h1 + b1_ref[...], 0.0)                    # (rows, 256)

    # ---- conv2 + ReLU: one matmul, contraction packed over (tap, cin) = 250.
    h2 = jnp.dot(h1.astype(bf16), w2_ref[...],
                 preferred_element_type=jnp.float32)
    h2 = jnp.maximum(h2 + b2_ref[...], 0.0)                    # (rows, 128)

    # ---- fc1 + ReLU: PyTorch's channel-major reshape(-1, 320) is folded into
    #      the per-position weight slabs; batched matmul + tree-sum over pos.
    h2c = h2.reshape(NPOS, bp, LANES)[:, :, :C2PAD].astype(bf16)   # (16,bp,32)
    h3 = jnp.einsum("pbc,pcf->pbf", h2c, w3_ref[...],
                    preferred_element_type=jnp.float32).sum(axis=0)
    h3 = jnp.maximum(h3 + b3_ref[...], 0.0)                    # (bp, 128)

    # ---- dropout: nn.Dropout() is identity at inference.
    # TODO(synk): train-mode dropout would need pltpu.prng_random_bits masking.

    # ---- fc2 (logits); lane-dense (bp, 128) store.
    o_ref[...] = jnp.dot(h3.astype(bf16), w4_ref[...],
                         preferred_element_type=jnp.float32) + b4_ref[...]


# ----------------------------------------------------------------------------
# Input prep: double im2col via static stride-2 slices (no fancy gather).
# ----------------------------------------------------------------------------
def _build_patches(x, bp):
    """(B,1,28,28) -> (NPOS*bp, NTAP*KPAD) bf16.
    row = (conv2 output position)*bp + batch,
    col = (conv2 tap i*5+j)*32 + (conv1 tap ki*5+kj),
    value = x[b, 0, 4*ho + 2*i + ki, 4*wo + 2*j + kj]."""
    b = x.shape[0]
    xs = x[:, 0].astype(jnp.float32)                       # (B, 28, 28)
    xs = jnp.pad(xs, ((0, bp - b), (0, 0), (0, 0)))        # batch -> bp
    # conv1-level im2col: 25 static stride-2 slices -> (25, bp, 12, 12)
    p1 = jnp.stack([xs[:, ki:ki + 2 * H1:2, kj:kj + 2 * H1:2]
                    for ki in range(K) for kj in range(K)], axis=0)
    # conv2-level im2col on top: -> (25, 25, bp, 4, 4)  [t2, k1, b, ho, wo]
    p2 = jnp.stack([p1[:, :, i:i + 2 * H2:2, j:j + 2 * H2:2]
                    for i in range(K) for j in range(K)], axis=0)
    # -> [ho, wo, b, t2, k1] -> rows (pos, b), cols (t2, k1)
    p2 = p2.transpose(3, 4, 2, 0, 1).reshape(NPOS * bp, NTAP, NTAP)
    p2 = jnp.pad(p2, ((0, 0), (0, 0), (0, KPAD - NTAP)))   # k1: 25 -> 32
    return p2.reshape(NPOS * bp, NTAP * KPAD).astype(jnp.bfloat16)


# ----------------------------------------------------------------------------
# Parameters: PyTorch-layout init + one-time compact/bf16 layout prep.
# ----------------------------------------------------------------------------
def init_params(key):
    def uniform(key, shape, fan_in):
        bound = 1.0 / jnp.sqrt(jnp.float32(fan_in))
        return jax.random.uniform(key, shape, jnp.float32, -bound, bound)

    ks = jax.random.split(key, 8)
    return {
        "conv1_w": uniform(ks[0], (C1, 1, K, K), 1 * K * K),
        "conv1_b": uniform(ks[1], (C1,), 1 * K * K),
        "conv2_w": uniform(ks[2], (C2, C1, K, K), C1 * K * K),
        "conv2_b": uniform(ks[3], (C2,), C1 * K * K),
        "fc1_w": uniform(ks[4], (F1, C2 * NPOS), C2 * NPOS),   # (80, 320)
        "fc1_b": uniform(ks[5], (F1,), C2 * NPOS),
        "fc2_w": uniform(ks[6], (F2, F1), F1),                 # (10, 80)
        "fc2_b": uniform(ks[7], (F2,), F1),
    }


def prepare_params(raw):
    """One-time layout prep: compact bf16 weights with all transposes, the
    (tap, cin) packing and the NCHW channel-major flatten folded in."""
    f32, bf16 = jnp.float32, jnp.bfloat16

    # conv1 -> block-diagonal (800, 256): row t*32+k, col t*10+c.
    w1c = raw["conv1_w"].astype(f32).reshape(C1, NTAP).T          # (25,10) [k,c]
    w1c = jnp.pad(w1c, ((0, KPAD - NTAP), (0, 0)))                # (32,10)
    w1_bd = jnp.einsum("tu,kc->tkuc", jnp.eye(NTAP, dtype=f32), w1c)
    w1_bd = w1_bd.reshape(NTAP * KPAD, NTAP * C1)                 # (800,250)
    w1_bd = jnp.pad(w1_bd, ((0, 0), (0, CPACK - NTAP * C1)))      # (800,256)
    b1 = jnp.tile(raw["conv1_b"].astype(f32), NTAP)               # (250,)
    b1 = jnp.pad(b1, (0, CPACK - NTAP * C1)).reshape(1, CPACK)

    # conv2 -> (256, 128): row t*10+c, col cout.
    w2 = raw["conv2_w"].astype(f32).transpose(2, 3, 1, 0)         # (5,5,10,20)
    w2 = w2.reshape(NTAP * C1, C2)                                # (250,20)
    w2 = jnp.pad(w2, ((0, CPACK - NTAP * C1), (0, LANES - C2)))   # (256,128)
    b2 = jnp.pad(raw["conv2_b"].astype(f32), (0, LANES - C2)).reshape(1, LANES)

    # fc1 -> (16, 32, 128): [pos, cin 20->32, feat 80->128]; the PyTorch
    # flatten index is c*16 + pos (channel-major), folded in here.
    w3 = raw["fc1_w"].astype(f32).T.reshape(C2, NPOS, F1)         # (20,16,80)
    w3 = w3.transpose(1, 0, 2)                                    # (16,20,80)
    w3 = jnp.pad(w3, ((0, 0), (0, C2PAD - C2), (0, LANES - F1)))  # (16,32,128)
    b3 = jnp.pad(raw["fc1_b"].astype(f32), (0, LANES - F1)).reshape(1, LANES)

    # fc2 -> (128, 128).
    w4 = jnp.pad(raw["fc2_w"].astype(f32).T,
                 ((0, LANES - F1), (0, LANES - F2)))
    b4 = jnp.pad(raw["fc2_b"].astype(f32), (0, LANES - F2)).reshape(1, LANES)

    return {"w1": w1_bd.astype(bf16), "b1": b1,
            "w2": w2.astype(bf16), "b2": b2,
            "w3": w3.astype(bf16), "b3": b3,
            "w4": w4.astype(bf16), "b4": b4}


# ----------------------------------------------------------------------------
# Forward pass (inference): patch build + ONE pallas_call.
# ----------------------------------------------------------------------------
def net_forward(params, x):
    b = x.shape[0]
    bp = max(8, ((b + 7) // 8) * 8)            # batch -> sublane multiple
    patches = _build_patches(x, bp)            # (16*bp, 800) bf16
    out = pl.pallas_call(
        _fused_net_kernel,
        out_shape=jax.ShapeDtypeStruct((bp, LANES), jnp.float32),
        in_specs=[pl.BlockSpec(memory_space=pltpu.MemorySpace.VMEM)] * 9,
        out_specs=pl.BlockSpec(memory_space=pltpu.MemorySpace.VMEM),
    )(patches, params["w1"], params["b1"], params["w2"], params["b2"],
      params["w3"], params["b3"], params["w4"], params["b4"])
    return out[:b, :F2]


# ----------------------------------------------------------------------------
# Pure-JAX f32 reference (independent conv path) for a sanity check.
# ----------------------------------------------------------------------------
def net_reference(raw, x):
    dn = ("NCHW", "OIHW", "NCHW")
    y = jax.lax.conv_general_dilated(x, raw["conv1_w"], (2, 2), "VALID",
                                     dimension_numbers=dn)
    y = jnp.maximum(y + raw["conv1_b"][None, :, None, None], 0.0)
    y = jax.lax.conv_general_dilated(y, raw["conv2_w"], (2, 2), "VALID",
                                     dimension_numbers=dn)
    y = jnp.maximum(y + raw["conv2_b"][None, :, None, None], 0.0)
    y = y.reshape(-1, C2 * NPOS)
    y = jnp.maximum(y @ raw["fc1_w"].T + raw["fc1_b"], 0.0)
    return y @ raw["fc2_w"].T + raw["fc2_b"]


if __name__ == "__main__":
    key = jax.random.PRNGKey(0)
    pkey, xkey = jax.random.split(key)
    raw = init_params(pkey)
    params = prepare_params(raw)

    # MNIST-shaped input: batch=2, 1 channel, 28x28 (required so flatten->320).
    x = jax.random.normal(xkey, (2, 1, 28, 28), dtype=jnp.float32)

    fwd = jax.jit(net_forward)
    out = jax.block_until_ready(fwd(params, x))
    assert out.shape == (2, 10), out.shape

    # Sanity check vs. f32 reference (kernel uses bf16 weights/patches).
    ref = net_reference(raw, x)
    err = float(jnp.max(jnp.abs(out - ref)))
    assert err < 1e-1, f"kernel/reference mismatch: max|err|={err}"
    print("KERNEL_OK")
</pallas_src>

<mosaic_0001>
module attributes {stable_mosaic.version = 11 : i64} {
  func.func @_fused_net_kernel(%arg0: memref<128x800xbf16, #tpu.memory_space<vmem>>, %arg1: memref<800x256xbf16, #tpu.memory_space<vmem>>, %arg2: memref<1x256xf32, #tpu.memory_space<vmem>>, %arg3: memref<256x128xbf16, #tpu.memory_space<vmem>>, %arg4: memref<1x128xf32, #tpu.memory_space<vmem>>, %arg5: memref<16x32x128xbf16, #tpu.memory_space<vmem>>, %arg6: memref<1x128xf32, #tpu.memory_space<vmem>>, %arg7: memref<128x128xbf16, #tpu.memory_space<vmem>>, %arg8: memref<1x128xf32, #tpu.memory_space<vmem>>, %arg9: memref<8x128xf32, #tpu.memory_space<vmem>>) attributes {dimension_semantics = [], scalar_prefetch = 0 : i64, scratch_operands = 0 : i64, tpu.core_type = #tpu.core_type<tc>} {
    %c0 = arith.constant 0 : index
    %c0_0 = arith.constant 0 : index
    %0 = vector.load %arg0[%c0, %c0_0] : memref<128x800xbf16, #tpu.memory_space<vmem>>, vector<128x800xbf16>
    %c0_1 = arith.constant 0 : index
    %c0_2 = arith.constant 0 : index
    %1 = vector.load %arg1[%c0_1, %c0_2] : memref<800x256xbf16, #tpu.memory_space<vmem>>, vector<800x256xbf16>
    %cst = arith.constant dense<0.000000e+00> : vector<128x256xf32>
    %2 = tpu.matmul %0, %1, %cst {dimension_numbers = #tpu.dot_dimension_numbers<[1], [0], [0], [1], [0, 0, 1, 1], [], []>} : vector<128x800xbf16>, vector<800x256xbf16>, vector<128x256xf32> -> vector<128x256xf32>
    %c0_3 = arith.constant 0 : index
    %c0_4 = arith.constant 0 : index
    %3 = vector.load %arg2[%c0_3, %c0_4] : memref<1x256xf32, #tpu.memory_space<vmem>>, vector<1x256xf32>
    %4 = vector.broadcast %3 : vector<1x256xf32> to vector<128x256xf32>
    %5 = arith.addf %2, %4 : vector<128x256xf32>
    %cst_5 = arith.constant 0.000000e+00 : f32
    %6 = vector.broadcast %cst_5 : f32 to vector<128x256xf32>
    %7 = arith.maximumf %5, %6 : vector<128x256xf32>
    %8 = arith.truncf %7 : vector<128x256xf32> to vector<128x256xbf16>
    %c0_6 = arith.constant 0 : index
    %c0_7 = arith.constant 0 : index
    %9 = vector.load %arg3[%c0_6, %c0_7] : memref<256x128xbf16, #tpu.memory_space<vmem>>, vector<256x128xbf16>
    %cst_8 = arith.constant dense<0.000000e+00> : vector<128x128xf32>
    %10 = tpu.matmul %8, %9, %cst_8 {dimension_numbers = #tpu.dot_dimension_numbers<[1], [0], [0], [1], [0, 0, 1, 1], [], []>} : vector<128x256xbf16>, vector<256x128xbf16>, vector<128x128xf32> -> vector<128x128xf32>
    %c0_9 = arith.constant 0 : index
    %c0_10 = arith.constant 0 : index
    %11 = vector.load %arg4[%c0_9, %c0_10] : memref<1x128xf32, #tpu.memory_space<vmem>>, vector<1x128xf32>
    %12 = vector.broadcast %11 : vector<1x128xf32> to vector<128x128xf32>
    %13 = arith.addf %10, %12 : vector<128x128xf32>
    %cst_11 = arith.constant 0.000000e+00 : f32
    %14 = vector.broadcast %cst_11 : f32 to vector<128x128xf32>
    %15 = arith.maximumf %13, %14 : vector<128x128xf32>
    %16 = vector.shape_cast %15 : vector<128x128xf32> to vector<16x8x128xf32>
    %17 = vector.extract_strided_slice %16 {offsets = [0, 0, 0], sizes = [16, 8, 32], strides = [1, 1, 1]} : vector<16x8x128xf32> to vector<16x8x32xf32>
    %18 = arith.truncf %17 : vector<16x8x32xf32> to vector<16x8x32xbf16>
    %c0_12 = arith.constant 0 : index
    %c0_13 = arith.constant 0 : index
    %c0_14 = arith.constant 0 : index
    %19 = vector.load %arg5[%c0_12, %c0_13, %c0_14] : memref<16x32x128xbf16, #tpu.memory_space<vmem>>, vector<16x32x128xbf16>
    "tpu.trace_start"() <{level = 10 : i32, message = "pbc,pcf->pbf"}> : () -> ()
    %cst_15 = arith.constant dense<0.000000e+00> : vector<16x8x128xf32>
    %20 = tpu.matmul %18, %19, %cst_15 {dimension_numbers = #tpu.dot_dimension_numbers<[2], [1], [1], [2], [0, 0, 0, 1, 1, 2], [0], [0]>} : vector<16x8x32xbf16>, vector<16x32x128xbf16>, vector<16x8x128xf32> -> vector<16x8x128xf32>
    "tpu.trace_stop"() : () -> ()
    %cst_16 = arith.constant dense<0.000000e+00> : vector<8x128xf32>
    %21 = vector.multi_reduction <add>, %20, %cst_16 [0] : vector<16x8x128xf32> to vector<8x128xf32>
    %c0_17 = arith.constant 0 : index
    %c0_18 = arith.constant 0 : index
    %22 = vector.load %arg6[%c0_17, %c0_18] : memref<1x128xf32, #tpu.memory_space<vmem>>, vector<1x128xf32>
    %23 = vector.broadcast %22 : vector<1x128xf32> to vector<8x128xf32>
    %24 = arith.addf %21, %23 : vector<8x128xf32>
    %cst_19 = arith.constant 0.000000e+00 : f32
    %25 = vector.broadcast %cst_19 : f32 to vector<8x128xf32>
    %26 = arith.maximumf %24, %25 : vector<8x128xf32>
    %27 = arith.truncf %26 : vector<8x128xf32> to vector<8x128xbf16>
    %c0_20 = arith.constant 0 : index
    %c0_21 = arith.constant 0 : index
    %28 = vector.load %arg7[%c0_20, %c0_21] : memref<128x128xbf16, #tpu.memory_space<vmem>>, vector<128x128xbf16>
    %cst_22 = arith.constant dense<0.000000e+00> : vector<8x128xf32>
    %29 = tpu.matmul %27, %28, %cst_22 {dimension_numbers = #tpu.dot_dimension_numbers<[1], [0], [0], [1], [0, 0, 1, 1], [], []>} : vector<8x128xbf16>, vector<128x128xbf16>, vector<8x128xf32> -> vector<8x128xf32>
    %c0_23 = arith.constant 0 : index
    %c0_24 = arith.constant 0 : index
    %30 = vector.load %arg8[%c0_23, %c0_24] : memref<1x128xf32, #tpu.memory_space<vmem>>, vector<1x128xf32>
    %31 = vector.broadcast %30 : vector<1x128xf32> to vector<8x128xf32>
    %32 = arith.addf %29, %31 : vector<8x128xf32>
    %c0_25 = arith.constant 0 : index
    %c0_26 = arith.constant 0 : index
    %33 = vector.load %arg9[%c0_25, %c0_26] : memref<8x128xf32, #tpu.memory_space<vmem>>, vector<8x128xf32>
    tpu.vector_store %arg9[%c0_25, %c0_26], %32 {strides = array<i32>} : memref<8x128xf32, #tpu.memory_space<vmem>>, vector<8x128xf32>,
    return
  }
}

</mosaic_0001>

<llo_original>
// kernel: net_forward.1
$region0: #{net_forward.1}
  #allocation0 [shape = 'u32[]', space=smem, size = 0x4, offset = 0x4, fixed_abs, tag = 'smem constant byte address 0x4 - core index']
  #allocation1 [shape = 'u32[144,128]{1,0:T(1,128)}', space=vmem, size = 0x12000, scoped, tag = 'internal scratch']
  %s0 = inlined_call_operand.vmem [shape: bf16[128,800], index: 0, kind: input, shape index: {}]
  %s1 = inlined_call_operand.vmem [shape: bf16[800,256], index: 1, kind: input, shape index: {}]
  %s2 = inlined_call_operand.vmem [shape: f32[1,256], index: 2, kind: input, shape index: {}]
  %s3 = inlined_call_operand.vmem [shape: bf16[256,128], index: 3, kind: input, shape index: {}]
  %s4 = inlined_call_operand.vmem [shape: f32[1,128], index: 4, kind: input, shape index: {}]
  %s5 = inlined_call_operand.vmem [shape: bf16[16,32,128], index: 5, kind: input, shape index: {}]
  %s6 = inlined_call_operand.vmem [shape: f32[1,128], index: 6, kind: input, shape index: {}]
  %s7 = inlined_call_operand.vmem [shape: bf16[128,128], index: 7, kind: input, shape index: {}]
  %s8 = inlined_call_operand.vmem [shape: f32[1,128], index: 8, kind: input, shape index: {}]
  %s9 = inlined_call_operand.vmem [shape: f32[8,128], index: 9, kind: output, shape index: {}]
  %s10 = sld [smem:[#allocation0]]
  $region46: #{net_forward.1} parent=0
    _
  %s12 = ssub.s32 1, %s10
  %s13 = scalar_select 0, %s12, %s10
  // Predicated region
  $region2: #{net_forward.1} parent=0 // pred_check
    _
  $region3: #{net_forward.1} parent=0 // pred_check_branch
    %15 = sbr.rel (0) target = $region5
  $region4: #{net_forward.1} parent=0 // pred_region
    _
  $region5: #{net_forward.1} parent=0 // pred_fallthru
    _
  // Predicated region
  $region6: #{net_forward.1} parent=0 // pred_check
    _
  $region7: #{net_forward.1} parent=0 // pred_check_branch
    %17 = sbr.rel (0) target = $region9
  $region8: #{net_forward.1} parent=0 // pred_region
    _
  $region9: #{net_forward.1} parent=0 // pred_fallthru
    _
  // Predicated region
  $region10: #{net_forward.1} parent=0 // pred_check
    _
  $region11: #{net_forward.1} parent=0 // pred_check_branch
    %19 = sbr.rel (0) target = $region13
  $region12: #{net_forward.1} parent=0 // pred_region
    _
  $region13: #{net_forward.1} parent=0 // pred_fallthru
    _
  // Predicated region
  $region14: #{net_forward.1} parent=0 // pred_check
    _
  $region15: #{net_forward.1} parent=0 // pred_check_branch
    %21 = sbr.rel (0) target = $region17
  $region16: #{net_forward.1} parent=0 // pred_region
    _
  $region17: #{net_forward.1} parent=0 // pred_fallthru
    _
  // Predicated region
  $region18: #{net_forward.1} parent=0 // pred_check
    _
  $region19: #{net_forward.1} parent=0 // pred_check_branch
    %23 = sbr.rel (0) target = $region21
  $region20: #{net_forward.1} parent=0 // pred_region
    _
  $region21: #{net_forward.1} parent=0 // pred_fallthru
    _
  // Predicated region
  $region22: #{net_forward.1} parent=0 // pred_check
    _
  $region23: #{net_forward.1} parent=0 // pred_check_branch
    %25 = sbr.rel (0) target = $region25
  $region24: #{net_forward.1} parent=0 // pred_region
    _
  $region25: #{net_forward.1} parent=0 // pred_fallthru
    _
  // Predicated region
  $region26: #{net_forward.1} parent=0 // pred_check
    _
  $region27: #{net_forward.1} parent=0 // pred_check_branch
    %27 = sbr.rel (0) target = $region29
  $region28: #{net_forward.1} parent=0 // pred_region
    _
  $region29: #{net_forward.1} parent=0 // pred_fallthru
    _
  // Predicated region
  $region30: #{net_forward.1} parent=0 // pred_check
    _
  $region31: #{net_forward.1} parent=0 // pred_check_branch
    %29 = sbr.rel (0) target = $region33
  $region32: #{net_forward.1} parent=0 // pred_region
    _
  $region33: #{net_forward.1} parent=0 // pred_fallthru
    _
  // Predicated region
  $region34: #{net_forward.1} parent=0 // pred_check
    _
  $region35: #{net_forward.1} parent=0 // pred_check_branch
    %31 = sbr.rel (0) target = $region37
  $region36: #{net_forward.1} parent=0 // pred_region
    _
  $region37: #{net_forward.1} parent=0 // pred_fallthru
    _
  %v33 = vld [vmem:[%s0] sm:$0xff]
  %v34 = vld [vmem:[%s0 + $0x8] sm:$0xff]
  %v35 = vld [vmem:[%s0 + $0x10] sm:$0xff]
  %v36 = vld [vmem:[%s0 + $0x18] sm:$0xf]
  %v37 = vld [vmem:[%s0 + $0x1c] sm:$0xff]
  %v38 = vld [vmem:[%s0 + $0x24] sm:$0xff]
  %v39 = vld [vmem:[%s0 + $0x2c] sm:$0xff]
  %v40 = vld [vmem:[%s0 + $0x34] sm:$0xf]
  %v41 = vld [vmem:[%s0 + $0x38] sm:$0xff]
  %v42 = vld [vmem:[%s0 + $0x40] sm:$0xff]
  %v43 = vld [vmem:[%s0 + $0x48] sm:$0xff]
  %v44 = vld [vmem:[%s0 + $0x50] sm:$0xf]
  %v45 = vld [vmem:[%s0 + $0x54] sm:$0xff]
  %v46 = vld [vmem:[%s0 + $0x5c] sm:$0xff]
  %v47 = vld [vmem:[%s0 + $0x64] sm:$0xff]
  %v48 = vld [vmem:[%s0 + $0x6c] sm:$0xf]
  %v49 = vld [vmem:[%s0 + $0x70] sm:$0xff]
  %v50 = vld [vmem:[%s0 + $0x78] sm:$0xff]
  %v51 = vld [vmem:[%s0 + $0x80] sm:$0xff]
  %v52 = vld [vmem:[%s0 + $0x88] sm:$0xf]
  %v53 = vld [vmem:[%s0 + $0x8c] sm:$0xff]
  %v54 = vld [vmem:[%s0 + $0x94] sm:$0xff]
  %v55 = vld [vmem:[%s0 + $0x9c] sm:$0xff]
  %v56 = vld [vmem:[%s0 + $0xa4] sm:$0xf]
  %v57 = vld [vmem:[%s0 + $0xa8] sm:$0xff]
  %v58 = vld [vmem:[%s0 + $0xb0] sm:$0xff]
  %v59 = vld [vmem:[%s0 + $0xb8] sm:$0xff]
  %v60 = vld [vmem:[%s0 + $0xc0] sm:$0xf]
  %v61 = vld [vmem:[%s0 + $0xc4] sm:$0xff]
  %v62 = vld [vmem:[%s0 + $0xcc] sm:$0xff]
  %v63 = vld [vmem:[%s0 + $0xd4] sm:$0xff]
  %v64 = vld [vmem:[%s0 + $0xdc] sm:$0xf]
  %v65 = vld [vmem:[%s0 + $0xe0] sm:$0xff]
  %v66 = vld [vmem:[%s0 + $0xe8] sm:$0xff]
  %v67 = vld [vmem:[%s0 + $0xf0] sm:$0xff]
  %v68 = vld [vmem:[%s0 + $0xf8] sm:$0xf]
  %v69 = vld [vmem:[%s0 + $0xfc] sm:$0xff]
  %v70 = vld [vmem:[%s0 + $0x104] sm:$0xff]
  %v71 = vld [vmem:[%s0 + $0x10c] sm:$0xff]
  %v72 = vld [vmem:[%s0 + $0x114] sm:$0xf]
  %v73 = vld [vmem:[%s0 + $0x118] sm:$0xff]
  %v74 = vld [vmem:[%s0 + $0x120] sm:$0xff]
  %v75 = vld [vmem:[%s0 + $0x128] sm:$0xff]
  %v76 = vld [vmem:[%s0 + $0x130] sm:$0xf]
  %v77 = vld [vmem:[%s0 + $0x134] sm:$0xff]
  %v78 = vld [vmem:[%s0 + $0x13c] sm:$0xff]
  %v79 = vld [vmem:[%s0 + $0x144] sm:$0xff]
  %v80 = vld [vmem:[%s0 + $0x14c] sm:$0xf]
  %v81 = vld [vmem:[%s0 + $0x150] sm:$0xff]
  %v82 = vld [vmem:[%s0 + $0x158] sm:$0xff]
  %v83 = vld [vmem:[%s0 + $0x160] sm:$0xff]
  %v84 = vld [vmem:[%s0 + $0x168] sm:$0xf]
  %v85 = vld [vmem:[%s0 + $0x16c] sm:$0xff]
  %v86 = vld [vmem:[%s0 + $0x174] sm:$0xff]
  %v87 = vld [vmem:[%s0 + $0x17c] sm:$0xff]
  %v88 = vld [vmem:[%s0 + $0x184] sm:$0xf]
  %v89 = vld [vmem:[%s0 + $0x188] sm:$0xff]
  %v90 = vld [vmem:[%s0 + $0x190] sm:$0xff]
  %v91 = vld [vmem:[%s0 + $0x198] sm:$0xff]
  %v92 = vld [vmem:[%s0 + $0x1a0] sm:$0xf]
  %v93 = vld [vmem:[%s0 + $0x1a4] sm:$0xff]
  %v94 = vld [vmem:[%s0 + $0x1ac] sm:$0xff]
  %v95 = vld [vmem:[%s0 + $0x1b4] sm:$0xff]
  %v96 = vld [vmem:[%s0 + $0x1bc] sm:$0xf]
  %v97 = vld [vmem:[%s1] sm:$0xff]
  %v98 = vld [vmem:[%s1 + $0x8] sm:$0xff]
  %v99 = vld [vmem:[%s1 + $0x10] sm:$0xff]
  %v100 = vld [vmem:[%s1 + $0x18] sm:$0xff]
  %v101 = vld [vmem:[%s1 + $0x20] sm:$0xff]
  %v102 = vld [vmem:[%s1 + $0x28] sm:$0xff]
  %v103 = vld [vmem:[%s1 + $0x30] sm:$0xff]
  %v104 = vld [vmem:[%s1 + $0x38] sm:$0xff]
  %v105 = vld [vmem:[%s1 + $0x40] sm:$0xff]
  %v106 = vld [vmem:[%s1 + $0x48] sm:$0xff]
  %v107 = vld [vmem:[%s1 + $0x50] sm:$0xff]
  %v108 = vld [vmem:[%s1 + $0x58] sm:$0xff]
  %v109 = vld [vmem:[%s1 + $0x60] sm:$0xff]
  %v110 = vld [vmem:[%s1 + $0x68] sm:$0xff]
  %v111 = vld [vmem:[%s1 + $0x70] sm:$0xff]
  %v112 = vld [vmem:[%s1 + $0x78] sm:$0xff]
  %v113 = vld [vmem:[%s1 + $0x80] sm:$0xff]
  %v114 = vld [vmem:[%s1 + $0x88] sm:$0xff]
  %v115 = vld [vmem:[%s1 + $0x90] sm:$0xff]
  %v116 = vld [vmem:[%s1 + $0x98] sm:$0xff]
  %v117 = vld [vmem:[%s1 + $0xa0] sm:$0xff]
  %v118 = vld [vmem:[%s1 + $0xa8] sm:$0xff]
  %v119 = vld [vmem:[%s1 + $0xb0] sm:$0xff]
  %v120 = vld [vmem:[%s1 + $0xb8] sm:$0xff]
  %v121 = vld [vmem:[%s1 + $0xc0] sm:$0xff]
  %v122 = vld [vmem:[%s1 + $0xc8] sm:$0xff]
  %v123 = vld [vmem:[%s1 + $0xd0] sm:$0xff]
  %v124 = vld [vmem:[%s1 + $0xd8] sm:$0xff]
  %v125 = vld [vmem:[%s1 + $0xe0] sm:$0xff]
  %v126 = vld [vmem:[%s1 + $0xe8] sm:$0xff]
  %v127 = vld [vmem:[%s1 + $0xf0] sm:$0xff]
  %v128 = vld [vmem:[%s1 + $0xf8] sm:$0xff]
  %v129 = vld [vmem:[%s1 + $0x100] sm:$0xff]
  %v130 = vld [vmem:[%s1 + $0x108] sm:$0xff]
  %v131 = vld [vmem:[%s1 + $0x110] sm:$0xff]
  %v132 = vld [vmem:[%s1 + $0x118] sm:$0xff]
  %v133 = vld [vmem:[%s1 + $0x120] sm:$0xff]
  %v134 = vld [vmem:[%s1 + $0x128] sm:$0xff]
  %v135 = vld [vmem:[%s1 + $0x130] sm:$0xff]
  %v136 = vld [vmem:[%s1 + $0x138] sm:$0xff]
  %v137 = vld [vmem:[%s1 + $0x140] sm:$0xff]
  %v138 = vld [vmem:[%s1 + $0x148] sm:$0xff]
  %v139 = vld [vmem:[%s1 + $0x150] sm:$0xff]
  %v140 = vld [vmem:[%s1 + $0x158] sm:$0xff]
  %v141 = vld [vmem:[%s1 + $0x160] sm:$0xff]
  %v142 = vld [vmem:[%s1 + $0x168] sm:$0xff]
  %v143 = vld [vmem:[%s1 + $0x170] sm:$0xff]
  %v144 = vld [vmem:[%s1 + $0x178] sm:$0xff]
  %v145 = vld [vmem:[%s1 + $0x180] sm:$0xff]
  %v146 = vld [vmem:[%s1 + $0x188] sm:$0xff]
  %v147 = vld [vmem:[%s1 + $0x190] sm:$0xff]
  %v148 = vld [vmem:[%s1 + $0x198] sm:$0xff]
  %v149 = vld [vmem:[%s1 + $0x1a0] sm:$0xff]
  %v150 = vld [vmem:[%s1 + $0x1a8] sm:$0xff]
  %v151 = vld [vmem:[%s1 + $0x1b0] sm:$0xff]
  %v152 = vld [vmem:[%s1 + $0x1b8] sm:$0xff]
  %v153 = vld [vmem:[%s1 + $0x1c0] sm:$0xff]
  %v154 = vld [vmem:[%s1 + $0x1c8] sm:$0xff]
  %v155 = vld [vmem:[%s1 + $0x1d0] sm:$0xff]
  %v156 = vld [vmem:[%s1 + $0x1d8] sm:$0xff]
  %v157 = vld [vmem:[%s1 + $0x1e0] sm:$0xff]
  %v158 = vld [vmem:[%s1 + $0x1e8] sm:$0xff]
  %v159 = vld [vmem:[%s1 + $0x1f0] sm:$0xff]
  %v160 = vld [vmem:[%s1 + $0x1f8] sm:$0xff]
  %v161 = vld [vmem:[%s1 + $0x200] sm:$0xff]
  %v162 = vld [vmem:[%s1 + $0x208] sm:$0xff]
  %v163 = vld [vmem:[%s1 + $0x210] sm:$0xff]
  %v164 = vld [vmem:[%s1 + $0x218] sm:$0xff]
  %v165 = vld [vmem:[%s1 + $0x220] sm:$0xff]
  %v166 = vld [vmem:[%s1 + $0x228] sm:$0xff]
  %v167 = vld [vmem:[%s1 + $0x230] sm:$0xff]
  %v168 = vld [vmem:[%s1 + $0x238] sm:$0xff]
  %v169 = vld [vmem:[%s1 + $0x240] sm:$0xff]
  %v170 = vld [vmem:[%s1 + $0x248] sm:$0xff]
  %v171 = vld [vmem:[%s1 + $0x250] sm:$0xff]
  %v172 = vld [vmem:[%s1 + $0x258] sm:$0xff]
  %v173 = vld [vmem:[%s1 + $0x260] sm:$0xff]
  %v174 = vld [vmem:[%s1 + $0x268] sm:$0xff]
  %v175 = vld [vmem:[%s1 + $0x270] sm:$0xff]
  %v176 = vld [vmem:[%s1 + $0x278] sm:$0xff]
  %v177 = vld [vmem:[%s1 + $0x280] sm:$0xff]
  %v178 = vld [vmem:[%s1 + $0x288] sm:$0xff]
  %v179 = vld [vmem:[%s1 + $0x290] sm:$0xff]
  %v180 = vld [vmem:[%s1 + $0x298] sm:$0xff]
  %v181 = vld [vmem:[%s1 + $0x2a0] sm:$0xff]
  %v182 = vld [vmem:[%s1 + $0x2a8] sm:$0xff]
  %v183 = vld [vmem:[%s1 + $0x2b0] sm:$0xff]
  %v184 = vld [vmem:[%s1 + $0x2b8] sm:$0xff]
  %v185 = vld [vmem:[%s1 + $0x2c0] sm:$0xff]
  %v186 = vld [vmem:[%s1 + $0x2c8] sm:$0xff]
  %v187 = vld [vmem:[%s1 + $0x2d0] sm:$0xff]
  %v188 = vld [vmem:[%s1 + $0x2d8] sm:$0xff]
  %v189 = vld [vmem:[%s1 + $0x2e0] sm:$0xff]
  %v190 = vld [vmem:[%s1 + $0x2e8] sm:$0xff]
  %v191 = vld [vmem:[%s1 + $0x2f0] sm:$0xff]
  %v192 = vld [vmem:[%s1 + $0x2f8] sm:$0xff]
  %v193 = vld [vmem:[%s1 + $0x300] sm:$0xff]
  %v194 = vld [vmem:[%s1 + $0x308] sm:$0xff]
  %v195 = vld [vmem:[%s1 + $0x310] sm:$0xff]
  %v196 = vld [vmem:[%s1 + $0x318] sm:$0xff]
  %v197 = vld [vmem:[%s2] sm:$0x3]
  %v199 = vlaneseq
  %v200 = vshrl.u32 %v199, 7
  %v201 = vsub.s32 0, %v200
  %v202 = vrot.slane %v197, %v201
  %v203 = vlaneseq
  %v204 = vshrl.u32 %v203, 7
  %v205 = vsub.s32 1, %v204
  %v206 = vrot.slane %v197, %v205
  %v273 = vunpack.c.l.b16 %v33
  %v274 = vunpack.c.h.b16 %v33
  %v275 = vunpack.c.l.b16 %v34
  %v276 = vunpack.c.h.b16 %v34
  %v277 = vunpack.c.l.b16 %v35
  %v278 = vunpack.c.h.b16 %v35
  %v279 = vunpack.c.l.b16 %v36
  %v280 = vunpack.c.l.b16 %v37
  %v281 = vunpack.c.h.b16 %v37
  %v282 = vunpack.c.l.b16 %v38
  %v283 = vunpack.c.h.b16 %v38
  %v284 = vunpack.c.l.b16 %v39
  %v285 = vunpack.c.h.b16 %v39
  %v286 = vunpack.c.l.b16 %v40
  %v287 = vunpack.c.l.b16 %v41
  %v288 = vunpack.c.h.b16 %v41
  %v289 = vunpack.c.l.b16 %v42
  %v290 = vunpack.c.h.b16 %v42
  %v291 = vunpack.c.l.b16 %v43
  %v292 = vunpack.c.h.b16 %v43
  %v293 = vunpack.c.l.b16 %v44
  %v294 = vunpack.c.l.b16 %v45
  %v295 = vunpack.c.h.b16 %v45
  %v296 = vunpack.c.l.b16 %v46
  %v297 = vunpack.c.h.b16 %v46
  %v298 = vunpack.c.l.b16 %v47
  %v299 = vunpack.c.h.b16 %v47
  %v300 = vunpack.c.l.b16 %v48
  %v301 = vunpack.c.l.b16 %v49
  %v302 = vunpack.c.h.b16 %v49
  %v303 = vunpack.c.l.b16 %v50
  %v304 = vunpack.c.h.b16 %v50
  %v305 = vunpack.c.l.b16 %v51
  %v306 = vunpack.c.h.b16 %v51
  %v307 = vunpack.c.l.b16 %v52
  %v308 = vunpack.c.l.b16 %v53
  %v309 = vunpack.c.h.b16 %v53
  %v310 = vunpack.c.l.b16 %v54
  %v311 = vunpack.c.h.b16 %v54
  %v312 = vunpack.c.l.b16 %v55
  %v313 = vunpack.c.h.b16 %v55
  %v314 = vunpack.c.l.b16 %v56
  %v315 = vunpack.c.l.b16 %v57
  %v316 = vunpack.c.h.b16 %v57
  %v317 = vunpack.c.l.b16 %v58
  %v318 = vunpack.c.h.b16 %v58
  %v319 = vunpack.c.l.b16 %v59
  %v320 = vunpack.c.h.b16 %v59
  %v321 = vunpack.c.l.b16 %v60
  %v322 = vunpack.c.l.b16 %v61
  %v323 = vunpack.c.h.b16 %v61
  %v324 = vunpack.c.l.b16 %v62
  %v325 = vunpack.c.h.b16 %v62
  %v326 = vunpack.c.l.b16 %v63
  %v327 = vunpack.c.h.b16 %v63
  %v328 = vunpack.c.l.b16 %v64
  %v329 = vunpack.c.l.b16 %v65
  %v330 = vunpack.c.h.b16 %v65
  %v331 = vunpack.c.l.b16 %v66
  %v332 = vunpack.c.h.b16 %v66
  %v333 = vunpack.c.l.b16 %v67
  %v334 = vunpack.c.h.b16 %v67
  %v335 = vunpack.c.l.b16 %v68
  %v336 = vunpack.c.l.b16 %v69
  %v337 = vunpack.c.h.b16 %v69
  %v338 = vunpack.c.l.b16 %v70
  %v339 = vunpack.c.h.b16 %v70
  %v340 = vunpack.c.l.b16 %v71
  %v341 = vunpack.c.h.b16 %v71
  %v342 = vunpack.c.l.b16 %v72
  %v343 = vunpack.c.l.b16 %v73
  %v344 = vunpack.c.h.b16 %v73
  %v345 = vunpack.c.l.b16 %v74
  %v346 = vunpack.c.h.b16 %v74
  %v347 = vunpack.c.l.b16 %v75
  %v348 = vunpack.c.h.b16 %v75
  %v349 = vunpack.c.l.b16 %v76
  %v350 = vunpack.c.l.b16 %v77
  %v351 = vunpack.c.h.b16 %v77
  %v352 = vunpack.c.l.b16 %v78
  %v353 = vunpack.c.h.b16 %v78
  %v354 = vunpack.c.l.b16 %v79
  %v355 = vunpack.c.h.b16 %v79
  %v356 = vunpack.c.l.b16 %v80
  %v357 = vunpack.c.l.b16 %v81
  %v358 = vunpack.c.h.b16 %v81
  %v359 = vunpack.c.l.b16 %v82
  %v360 = vunpack.c.h.b16 %v82
  %v361 = vunpack.c.l.b16 %v83
  %v362 = vunpack.c.h.b16 %v83
  %v363 = vunpack.c.l.b16 %v84
  %v364 = vunpack.c.l.b16 %v85
  %v365 = vunpack.c.h.b16 %v85
  %v366 = vunpack.c.l.b16 %v86
  %v367 = vunpack.c.h.b16 %v86
  %v368 = vunpack.c.l.b16 %v87
  %v369 = vunpack.c.h.b16 %v87
  %v370 = vunpack.c.l.b16 %v88
  %v371 = vunpack.c.l.b16 %v89
  %v372 = vunpack.c.h.b16 %v89
  %v373 = vunpack.c.l.b16 %v90
  %v374 = vunpack.c.h.b16 %v90
  %v375 = vunpack.c.l.b16 %v91
  %v376 = vunpack.c.h.b16 %v91
  %v377 = vunpack.c.l.b16 %v92
  %v378 = vunpack.c.l.b16 %v93
  %v379 = vunpack.c.h.b16 %v93
  %v380 = vunpack.c.l.b16 %v94
  %v381 = vunpack.c.h.b16 %v94
  %v382 = vunpack.c.l.b16 %v95
  %v383 = vunpack.c.h.b16 %v95
  %v384 = vunpack.c.l.b16 %v96
  %v385 = vpack.c.b16 %v280, %v273
  %v386 = vpack.c.b16 %v281, %v274
  %v387 = vpack.c.b16 %v282, %v275
  %v388 = vpack.c.b16 %v283, %v276
  %v389 = vpack.c.b16 %v284, %v277
  %v390 = vpack.c.b16 %v285, %v278
  %v391 = vpack.c.b16 %v286, %v279
  %v392 = vpack.c.b16 %v294, %v287
  %v393 = vpack.c.b16 %v295, %v288
  %v394 = vpack.c.b16 %v296, %v289
  %v395 = vpack.c.b16 %v297, %v290
  %v396 = vpack.c.b16 %v298, %v291
  %v397 = vpack.c.b16 %v299, %v292
  %v398 = vpack.c.b16 %v300, %v293
  %v399 = vpack.c.b16 %v308, %v301
  %v400 = vpack.c.b16 %v309, %v302
  %v401 = vpack.c.b16 %v310, %v303
  %v402 = vpack.c.b16 %v311, %v304
  %v403 = vpack.c.b16 %v312, %v305
  %v404 = vpack.c.b16 %v313, %v306
  %v405 = vpack.c.b16 %v314, %v307
  %v406 = vpack.c.b16 %v322, %v315
  %v407 = vpack.c.b16 %v323, %v316
  %v408 = vpack.c.b16 %v324, %v317
  %v409 = vpack.c.b16 %v325, %v318
  %v410 = vpack.c.b16 %v326, %v319
  %v411 = vpack.c.b16 %v327, %v320
  %v412 = vpack.c.b16 %v328, %v321
  %v413 = vpack.c.b16 %v336, %v329
  %v414 = vpack.c.b16 %v337, %v330
  %v415 = vpack.c.b16 %v338, %v331
  %v416 = vpack.c.b16 %v339, %v332
  %v417 = vpack.c.b16 %v340, %v333
  %v418 = vpack.c.b16 %v341, %v334
  %v419 = vpack.c.b16 %v342, %v335
  %v420 = vpack.c.b16 %v350, %v343
  %v421 = vpack.c.b16 %v351, %v344
  %v422 = vpack.c.b16 %v352, %v345
  %v423 = vpack.c.b16 %v353, %v346
  %v424 = vpack.c.b16 %v354, %v347
  %v425 = vpack.c.b16 %v355, %v348
  %v426 = vpack.c.b16 %v356, %v349
  %v427 = vpack.c.b16 %v364, %v357
  %v428 = vpack.c.b16 %v365, %v358
  %v429 = vpack.c.b16 %v366, %v359
  %v430 = vpack.c.b16 %v367, %v360
  %v431 = vpack.c.b16 %v368, %v361
  %v432 = vpack.c.b16 %v369, %v362
  %v433 = vpack.c.b16 %v370, %v363
  %v434 = vpack.c.b16 %v378, %v371
  %v435 = vpack.c.b16 %v379, %v372
  %v436 = vpack.c.b16 %v380, %v373
  %v437 = vpack.c.b16 %v381, %v374
  %v438 = vpack.c.b16 %v382, %v375
  %v439 = vpack.c.b16 %v383, %v376
  %v440 = vpack.c.b16 %v384, %v377
  %v589 = vunpack.c.l.b16 %v97
  %v590 = vunpack.c.h.b16 %v97
  %v591 = vunpack.c.l.b16 %v98
  %v592 = vunpack.c.h.b16 %v98
  %v593 = vunpack.c.l.b16 %v99
  %v594 = vunpack.c.h.b16 %v99
  %v595 = vunpack.c.l.b16 %v100
  %v596 = vunpack.c.h.b16 %v100
  %v597 = vunpack.c.l.b16 %v101
  %v598 = vunpack.c.h.b16 %v101
  %v599 = vunpack.c.l.b16 %v102
  %v600 = vunpack.c.h.b16 %v102
  %v601 = vunpack.c.l.b16 %v103
  %v602 = vunpack.c.h.b16 %v103
  %v603 = vunpack.c.l.b16 %v104
  %v604 = vunpack.c.h.b16 %v104
  %v605 = vunpack.c.l.b16 %v105
  %v606 = vunpack.c.h.b16 %v105
  %v607 = vunpack.c.l.b16 %v106
  %v608 = vunpack.c.h.b16 %v106
  %v609 = vunpack.c.l.b16 %v107
  %v610 = vunpack.c.h.b16 %v107
  %v611 = vunpack.c.l.b16 %v108
  %v612 = vunpack.c.h.b16 %v108
  %v613 = vunpack.c.l.b16 %v109
  %v614 = vunpack.c.h.b16 %v109
  %v615 = vunpack.c.l.b16 %v110
  %v616 = vunpack.c.h.b16 %v110
  %v617 = vunpack.c.l.b16 %v111
  %v618 = vunpack.c.h.b16 %v111
  %v619 = vunpack.c.l.b16 %v112
  %v620 = vunpack.c.h.b16 %v112
  %v621 = vunpack.c.l.b16 %v113
  %v622 = vunpack.c.h.b16 %v113
  %v623 = vunpack.c.l.b16 %v114
  %v624 = vunpack.c.h.b16 %v114
  %v625 = vunpack.c.l.b16 %v115
  %v626 = vunpack.c.h.b16 %v115
  %v627 = vunpack.c.l.b16 %v116
  %v628 = vunpack.c.h.b16 %v116
  %v629 = vunpack.c.l.b16 %v117
  %v630 = vunpack.c.h.b16 %v117
  %v631 = vunpack.c.l.b16 %v118
  %v632 = vunpack.c.h.b16 %v118
  %v633 = vunpack.c.l.b16 %v119
  %v634 = vunpack.c.h.b16 %v119
  %v635 = vunpack.c.l.b16 %v120
  %v636 = vunpack.c.h.b16 %v120
  %v637 = vunpack.c.l.b16 %v121
  %v638 = vunpack.c.h.b16 %v121
  %v639 = vunpack.c.l.b16 %v122
  %v640 = vunpack.c.h.b16 %v122
  %v641 = vunpack.c.l.b16 %v123
  %v642 = vunpack.c.h.b16 %v123
  %v643 = vunpack.c.l.b16 %v124
  %v644 = vunpack.c.h.b16 %v124
  %v645 = vunpack.c.l.b16 %v125
  %v646 = vunpack.c.h.b16 %v125
  %v647 = vunpack.c.l.b16 %v126
  %v648 = vunpack.c.h.b16 %v126
  %v649 = vunpack.c.l.b16 %v127
  %v650 = vunpack.c.h.b16 %v127
  %v651 = vunpack.c.l.b16 %v128
  %v652 = vunpack.c.h.b16 %v128
  %v653 = vunpack.c.l.b16 %v129
  %v654 = vunpack.c.h.b16 %v129
  %v655 = vunpack.c.l.b16 %v130
  %v656 = vunpack.c.h.b16 %v130
  %v657 = vunpack.c.l.b16 %v131
  %v658 = vunpack.c.h.b16 %v131
  %v659 = vunpack.c.l.b16 %v132
  %v660 = vunpack.c.h.b16 %v132
  %v661 = vunpack.c.l.b16 %v133
  %v662 = vunpack.c.h.b16 %v133
  %v663 = vunpack.c.l.b16 %v134
  %v664 = vunpack.c.h.b16 %v134
  %v665 = vunpack.c.l.b16 %v135
  %v666 = vunpack.c.h.b16 %v135
  %v667 = vunpack.c.l.b16 %v136
  %v668 = vunpack.c.h.b16 %v136
  %v669 = vunpack.c.l.b16 %v137
  %v670 = vunpack.c.h.b16 %v137
  %v671 = vunpack.c.l.b16 %v138
  %v672 = vunpack.c.h.b16 %v138
  %v673 = vunpack.c.l.b16 %v139
  %v674 = vunpack.c.h.b16 %v139
  %v675 = vunpack.c.l.b16 %v140
  %v676 = vunpack.c.h.b16 %v140
  %v677 = vunpack.c.l.b16 %v141
  %v678 = vunpack.c.h.b16 %v141
  %v679 = vunpack.c.l.b16 %v142
  %v680 = vunpack.c.h.b16 %v142
  %v681 = vunpack.c.l.b16 %v143
  %v682 = vunpack.c.h.b16 %v143
  %v683 = vunpack.c.l.b16 %v144
  %v684 = vunpack.c.h.b16 %v144
  %v685 = vunpack.c.l.b16 %v145
  %v686 = vunpack.c.h.b16 %v145
  %v687 = vunpack.c.l.b16 %v146
  %v688 = vunpack.c.h.b16 %v146
  %v689 = vunpack.c.l.b16 %v147
  %v690 = vunpack.c.h.b16 %v147
  %v691 = vunpack.c.l.b16 %v148
  %v692 = vunpack.c.h.b16 %v148
  %v693 = vunpack.c.l.b16 %v149
  %v694 = vunpack.c.h.b16 %v149
  %v695 = vunpack.c.l.b16 %v150
  %v696 = vunpack.c.h.b16 %v150
  %v697 = vunpack.c.l.b16 %v151
  %v698 = vunpack.c.h.b16 %v151
  %v699 = vunpack.c.l.b16 %v152
  %v700 = vunpack.c.h.b16 %v152
  %v701 = vunpack.c.l.b16 %v153
  %v702 = vunpack.c.h.b16 %v153
  %v703 = vunpack.c.l.b16 %v154
  %v704 = vunpack.c.h.b16 %v154
  %v705 = vunpack.c.l.b16 %v155
  %v706 = vunpack.c.h.b16 %v155
  %v707 = vunpack.c.l.b16 %v156
  %v708 = vunpack.c.h.b16 %v156
  %v709 = vunpack.c.l.b16 %v157
  %v710 = vunpack.c.h.b16 %v157
  %v711 = vunpack.c.l.b16 %v158
  %v712 = vunpack.c.h.b16 %v158
  %v713 = vunpack.c.l.b16 %v159
  %v714 = vunpack.c.h.b16 %v159
  %v715 = vunpack.c.l.b16 %v160
  %v716 = vunpack.c.h.b16 %v160
  %v717 = vunpack.c.l.b16 %v161
  %v718 = vunpack.c.h.b16 %v161
  %v719 = vunpack.c.l.b16 %v162
  %v720 = vunpack.c.h.b16 %v162
  %v721 = vunpack.c.l.b16 %v163
  %v722 = vunpack.c.h.b16 %v163
  %v723 = vunpack.c.l.b16 %v164
  %v724 = vunpack.c.h.b16 %v164
  %v725 = vunpack.c.l.b16 %v165
  %v726 = vunpack.c.h.b16 %v165
  %v727 = vunpack.c.l.b16 %v166
  %v728 = vunpack.c.h.b16 %v166
  %v729 = vunpack.c.l.b16 %v167
  %v730 = vunpack.c.h.b16 %v167
  %v731 = vunpack.c.l.b16 %v168
  %v732 = vunpack.c.h.b16 %v168
  %v733 = vunpack.c.l.b16 %v169
  %v734 = vunpack.c.h.b16 %v169
  %v735 = vunpack.c.l.b16 %v170
  %v736 = vunpack.c.h.b16 %v170
  %v737 = vunpack.c.l.b16 %v171
  %v738 = vunpack.c.h.b16 %v171
  %v739 = vunpack.c.l.b16 %v172
  %v740 = vunpack.c.h.b16 %v172
  %v741 = vunpack.c.l.b16 %v173
  %v742 = vunpack.c.h.b16 %v173
  %v743 = vunpack.c.l.b16 %v174
  %v744 = vunpack.c.h.b16 %v174
  %v745 = vunpack.c.l.b16 %v175
  %v746 = vunpack.c.h.b16 %v175
  %v747 = vunpack.c.l.b16 %v176
  %v748 = vunpack.c.h.b16 %v176
  %v749 = vunpack.c.l.b16 %v177
  %v750 = vunpack.c.h.b16 %v177
  %v751 = vunpack.c.l.b16 %v178
  %v752 = vunpack.c.h.b16 %v178
  %v753 = vunpack.c.l.b16 %v179
  %v754 = vunpack.c.h.b16 %v179
  %v755 = vunpack.c.l.b16 %v180
  %v756 = vunpack.c.h.b16 %v180
  %v757 = vunpack.c.l.b16 %v181
  %v758 = vunpack.c.h.b16 %v181
  %v759 = vunpack.c.l.b16 %v182
  %v760 = vunpack.c.h.b16 %v182
  %v761 = vunpack.c.l.b16 %v183
  %v762 = vunpack.c.h.b16 %v183
  %v763 = vunpack.c.l.b16 %v184
  %v764 = vunpack.c.h.b16 %v184
  %v765 = vunpack.c.l.b16 %v185
  %v766 = vunpack.c.h.b16 %v185
  %v767 = vunpack.c.l.b16 %v186
  %v768 = vunpack.c.h.b16 %v186
  %v769 = vunpack.c.l.b16 %v187
  %v770 = vunpack.c.h.b16 %v187
  %v771 = vunpack.c.l.b16 %v188
  %v772 = vunpack.c.h.b16 %v188
  %v773 = vunpack.c.l.b16 %v189
  %v774 = vunpack.c.h.b16 %v189
  %v775 = vunpack.c.l.b16 %v190
  %v776 = vunpack.c.h.b16 %v190
  %v777 = vunpack.c.l.b16 %v191
  %v778 = vunpack.c.h.b16 %v191
  %v779 = vunpack.c.l.b16 %v192
  %v780 = vunpack.c.h.b16 %v192
  %v781 = vunpack.c.l.b16 %v193
  %v782 = vunpack.c.h.b16 %v193
  %v783 = vunpack.c.l.b16 %v194
  %v784 = vunpack.c.h.b16 %v194
  %v785 = vunpack.c.l.b16 %v195
  %v786 = vunpack.c.h.b16 %v195
  %v787 = vunpack.c.l.b16 %v196
  %v788 = vunpack.c.h.b16 %v196
  %v789 = vpack.c.b16 %v591, %v589
  %v790 = vpack.c.b16 %v592, %v590
  %v791 = vpack.c.b16 %v595, %v593
  %v792 = vpack.c.b16 %v596, %v594
  %v793 = vpack.c.b16 %v599, %v597
  %v794 = vpack.c.b16 %v600, %v598
  %v795 = vpack.c.b16 %v603, %v601
  %v796 = vpack.c.b16 %v604, %v602
  %v797 = vpack.c.b16 %v607, %v605
  %v798 = vpack.c.b16 %v608, %v606
  %v799 = vpack.c.b16 %v611, %v609
  %v800 = vpack.c.b16 %v612, %v610
  %v801 = vpack.c.b16 %v615, %v613
  %v802 = vpack.c.b16 %v616, %v614
  %v803 = vpack.c.b16 %v619, %v617
  %v804 = vpack.c.b16 %v620, %v618
  %v805 = vpack.c.b16 %v623, %v621
  %v806 = vpack.c.b16 %v624, %v622
  %v807 = vpack.c.b16 %v627, %v625
  %v808 = vpack.c.b16 %v628, %v626
  %v809 = vpack.c.b16 %v631, %v629
  %v810 = vpack.c.b16 %v632, %v630
  %v811 = vpack.c.b16 %v635, %v633
  %v812 = vpack.c.b16 %v636, %v634
  %v813 = vpack.c.b16 %v639, %v637
  %v814 = vpack.c.b16 %v640, %v638
  %v815 = vpack.c.b16 %v643, %v641
  %v816 = vpack.c.b16 %v644, %v642
  %v817 = vpack.c.b16 %v647, %v645
  %v818 = vpack.c.b16 %v648, %v646
  %v819 = vpack.c.b16 %v651, %v649
  %v820 = vpack.c.b16 %v652, %v650
  %v821 = vpack.c.b16 %v655, %v653
  %v822 = vpack.c.b16 %v656, %v654
  %v823 = vpack.c.b16 %v659, %v657
  %v824 = vpack.c.b16 %v660, %v658
  %v825 = vpack.c.b16 %v663, %v661
  %v826 = vpack.c.b16 %v664, %v662
  %v827 = vpack.c.b16 %v667, %v665
  %v828 = vpack.c.b16 %v668, %v666
  %v829 = vpack.c.b16 %v671, %v669
  %v830 = vpack.c.b16 %v672, %v670
  %v831 = vpack.c.b16 %v675, %v673
  %v832 = vpack.c.b16 %v676, %v674
  %v833 = vpack.c.b16 %v679, %v677
  %v834 = vpack.c.b16 %v680, %v678
  %v835 = vpack.c.b16 %v683, %v681
  %v836 = vpack.c.b16 %v684, %v682
  %v837 = vpack.c.b16 %v687, %v685
  %v838 = vpack.c.b16 %v688, %v686
  %v839 = vpack.c.b16 %v691, %v689
  %v840 = vpack.c.b16 %v692, %v690
  %v841 = vpack.c.b16 %v695, %v693
  %v842 = vpack.c.b16 %v696, %v694
  %v843 = vpack.c.b16 %v699, %v697
  %v844 = vpack.c.b16 %v700, %v698
  %v845 = vpack.c.b16 %v703, %v701
  %v846 = vpack.c.b16 %v704, %v702
  %v847 = vpack.c.b16 %v707, %v705
  %v848 = vpack.c.b16 %v708, %v706
  %v849 = vpack.c.b16 %v711, %v709
  %v850 = vpack.c.b16 %v712, %v710
  %v851 = vpack.c.b16 %v715, %v713
  %v852 = vpack.c.b16 %v716, %v714
  %v853 = vpack.c.b16 %v719, %v717
  %v854 = vpack.c.b16 %v720, %v718
  %v855 = vpack.c.b16 %v723, %v721
  %v856 = vpack.c.b16 %v724, %v722
  %v857 = vpack.c.b16 %v727, %v725
  %v858 = vpack.c.b16 %v728, %v726
  %v859 = vpack.c.b16 %v731, %v729
  %v860 = vpack.c.b16 %v732, %v730
  %v861 = vpack.c.b16 %v735, %v733
  %v862 = vpack.c.b16 %v736, %v734
  %v863 = vpack.c.b16 %v739, %v737
  %v864 = vpack.c.b16 %v740, %v738
  %v865 = vpack.c.b16 %v743, %v741
  %v866 = vpack.c.b16 %v744, %v742
  %v867 = vpack.c.b16 %v747, %v745
  %v868 = vpack.c.b16 %v748, %v746
  %v869 = vpack.c.b16 %v751, %v749
  %v870 = vpack.c.b16 %v752, %v750
  %v871 = vpack.c.b16 %v755, %v753
  %v872 = vpack.c.b16 %v756, %v754
  %v873 = vpack.c.b16 %v759, %v757
  %v874 = vpack.c.b16 %v760, %v758
  %v875 = vpack.c.b16 %v763, %v761
  %v876 = vpack.c.b16 %v764, %v762
  %v877 = vpack.c.b16 %v767, %v765
  %v878 = vpack.c.b16 %v768, %v766
  %v879 = vpack.c.b16 %v771, %v769
  %v880 = vpack.c.b16 %v772, %v770
  %v881 = vpack.c.b16 %v775, %v773
  %v882 = vpack.c.b16 %v776, %v774
  %v883 = vpack.c.b16 %v779, %v777
  %v884 = vpack.c.b16 %v780, %v778
  %v885 = vpack.c.b16 %v783, %v781
  %v886 = vpack.c.b16 %v784, %v782
  %v887 = vpack.c.b16 %v787, %v785
  %v888 = vpack.c.b16 %v788, %v786
  %vm989 = vcmask 261120
  %v991 = vsel %vm989, %v391, 0
  %v994 = vsel %vm989, %v398, 0
  %v997 = vsel %vm989, %v405, 0
  %v1000 = vsel %vm989, %v412, 0
  %v1003 = vsel %vm989, %v419, 0
  %v1006 = vsel %vm989, %v426, 0
  %v1009 = vsel %vm989, %v433, 0
  %v1012 = vsel %vm989, %v440, 0
  %1014 = vmatprep.subr.bf16.mxu0 %v804
  %1015 = vmatpush1.bf16.msra.mxu0 %v803
  %1016 = vmatprep.subr.bf16.mxu0 %v802
  %1017 = vmatpush1.bf16.msra.mxu0 %v801
  %1018 = vmatprep.subr.bf16.mxu0 %v800
  %1019 = vmatpush1.bf16.msra.mxu0 %v799
  %1020 = vmatprep.subr.bf16.mxu0 %v798
  %1021 = vmatpush1.bf16.msra.mxu0 %v797
  %1022 = vmatprep.subr.bf16.mxu0 %v796
  %1023 = vmatpush1.bf16.msra.mxu0 %v795
  %1024 = vmatprep.subr.bf16.mxu0 %v794
  %1025 = vmatpush1.bf16.msra.mxu0 %v793
  %1026 = vmatprep.subr.bf16.mxu0 %v792
  %1027 = vmatpush1.bf16.msra.mxu0 %v791
  %1028 = vmatprep.subr.bf16.mxu0 %v790
  %1029 = vmatpush1.bf16.msra.mxu0 %v789
  %1030 = vmatprep.subr.bf16.mxu0 %v820
  %1031 = vmatpush2.bf16.msra.mxu0 %v819
  %1032 = vmatprep.subr.bf16.mxu0 %v818
  %1033 = vmatpush2.bf16.msra.mxu0 %v817
  %1034 = vmatprep.subr.bf16.mxu0 %v816
  %1035 = vmatpush2.bf16.msra.mxu0 %v815
  %1036 = vmatprep.subr.bf16.mxu0 %v814
  %1037 = vmatpush2.bf16.msra.mxu0 %v813
  %1038 = vmatprep.subr.bf16.mxu0 %v812
  %1039 = vmatpush2.bf16.msra.mxu0 %v811
  %1040 = vmatprep.subr.bf16.mxu0 %v810
  %1041 = vmatpush2.bf16.msra.mxu0 %v809
  %1042 = vmatprep.subr.bf16.mxu0 %v808
  %1043 = vmatpush2.bf16.msra.mxu0 %v807
  %1044 = vmatprep.subr.bf16.mxu0 %v806
  %1045 = vmatpush2.bf16.msra.mxu0 %v805
  %1046 = vmatprep.mubr.bf16.mxu0 %v386
  %1047 = vmatmul.mubr.bf16.gmra.mxu0 %v385
  %v1048 = vpop.f32.mrf.mxu0
  %v1049 = vadd.f32 %v202, %v1048
  %v1050 = vpop.f32.mrf.mxu0
  %v1051 = vadd.f32 %v206, %v1050
  %v1052 = vpop.f32.mrf.mxu0
  %v1053 = vadd.f32 %v202, %v1052
  %v1054 = vpop.f32.mrf.mxu0
  %v1055 = vadd.f32 %v206, %v1054
  %1056 = vmatprep.mubr.bf16.mxu0 %v393
  %1057 = vmatmul.mubr.bf16.gmra.mxu0 %v392
  %v1058 = vpop.f32.mrf.mxu0
  %v1059 = vadd.f32 %v202, %v1058
  %v1060 = vpop.f32.mrf.mxu0
  %v1061 = vadd.f32 %v206, %v1060
  %v1062 = vpop.f32.mrf.mxu0
  %v1063 = vadd.f32 %v202, %v1062
  %v1064 = vpop.f32.mrf.mxu0
  %v1065 = vadd.f32 %v206, %v1064
  %1066 = vmatprep.mubr.bf16.mxu0 %v400
  %1067 = vmatmul.mubr.bf16.gmra.mxu0 %v399
  %v1068 = vpop.f32.mrf.mxu0
  %v1069 = vadd.f32 %v202, %v1068
  %v1070 = vpop.f32.mrf.mxu0
  %v1071 = vadd.f32 %v206, %v1070
  %v1072 = vpop.f32.mrf.mxu0
  %v1073 = vadd.f32 %v202, %v1072
  %v1074 = vpop.f32.mrf.mxu0
  %v1075 = vadd.f32 %v206, %v1074
  %1076 = vmatprep.mubr.bf16.mxu0 %v407
  %1077 = vmatmul.mubr.bf16.gmra.mxu0 %v406
  %v1078 = vpop.f32.mrf.mxu0
  %v1079 = vadd.f32 %v202, %v1078
  %v1080 = vpop.f32.mrf.mxu0
  %v1081 = vadd.f32 %v206, %v1080
  %v1082 = vpop.f32.mrf.mxu0
  %v1083 = vadd.f32 %v202, %v1082
  %v1084 = vpop.f32.mrf.mxu0
  %v1085 = vadd.f32 %v206, %v1084
  %1086 = vmatprep.mubr.bf16.mxu0 %v414
  %1087 = vmatmul.mubr.bf16.gmra.mxu0 %v413
  %v1088 = vpop.f32.mrf.mxu0
  %v1089 = vadd.f32 %v202, %v1088
  %v1090 = vpop.f32.mrf.mxu0
  %v1091 = vadd.f32 %v206, %v1090
  %v1092 = vpop.f32.mrf.mxu0
  %v1093 = vadd.f32 %v202, %v1092
  %v1094 = vpop.f32.mrf.mxu0
  %v1095 = vadd.f32 %v206, %v1094
  %1096 = vmatprep.mubr.bf16.mxu0 %v421
  %1097 = vmatmul.mubr.bf16.gmra.mxu0 %v420
  %v1098 = vpop.f32.mrf.mxu0
  %v1099 = vadd.f32 %v202, %v1098
  %v1100 = vpop.f32.mrf.mxu0
  %v1101 = vadd.f32 %v206, %v1100
  %v1102 = vpop.f32.mrf.mxu0
  %v1103 = vadd.f32 %v202, %v1102
  %v1104 = vpop.f32.mrf.mxu0
  %v1105 = vadd.f32 %v206, %v1104
  %1106 = vmatprep.mubr.bf16.mxu0 %v428
  %1107 = vmatmul.mubr.bf16.gmra.mxu0 %v427
  %v1108 = vpop.f32.mrf.mxu0
  %v1109 = vadd.f32 %v202, %v1108
  %v1110 = vpop.f32.mrf.mxu0
  %v1111 = vadd.f32 %v206, %v1110
  %v1112 = vpop.f32.mrf.mxu0
  %v1113 = vadd.f32 %v202, %v1112
  %v1114 = vpop.f32.mrf.mxu0
  %v1115 = vadd.f32 %v206, %v1114
  %1116 = vmatprep.mubr.bf16.mxu0 %v435
  %1117 = vmatmul.mubr.bf16.gmra.mxu0 %v434
  %v1118 = vpop.f32.mrf.mxu0
  %v1119 = vadd.f32 %v202, %v1118
  %v1120 = vpop.f32.mrf.mxu0
  %v1121 = vadd.f32 %v206, %v1120
  %v1122 = vpop.f32.mrf.mxu0
  %v1123 = vadd.f32 %v202, %v1122
  %v1124 = vpop.f32.mrf.mxu0
  %v1125 = vadd.f32 %v206, %v1124
  %1126 = vdwg.mxu0
  %1127 = vmatprep.subr.bf16.mxu0 %v836
  %1128 = vmatpush1.bf16.msra.mxu0 %v835
  %1129 = vmatprep.subr.bf16.mxu0 %v834
  %1130 = vmatpush1.bf16.msra.mxu0 %v833
  %1131 = vmatprep.subr.bf16.mxu0 %v832
  %1132 = vmatpush1.bf16.msra.mxu0 %v831
  %1133 = vmatprep.subr.bf16.mxu0 %v830
  %1134 = vmatpush1.bf16.msra.mxu0 %v829
  %1135 = vmatprep.subr.bf16.mxu0 %v828
  %1136 = vmatpush1.bf16.msra.mxu0 %v827
  %1137 = vmatprep.subr.bf16.mxu0 %v826
  %1138 = vmatpush1.bf16.msra.mxu0 %v825
  %1139 = vmatprep.subr.bf16.mxu0 %v824
  %1140 = vmatpush1.bf16.msra.mxu0 %v823
  %1141 = vmatprep.subr.bf16.mxu0 %v822
  %1142 = vmatpush1.bf16.msra.mxu0 %v821
  %1143 = vmatprep.subr.bf16.mxu0 %v852
  %1144 = vmatpush2.bf16.msra.mxu0 %v851
  %1145 = vmatprep.subr.bf16.mxu0 %v850
  %1146 = vmatpush2.bf16.msra.mxu0 %v849
  %1147 = vmatprep.subr.bf16.mxu0 %v848
  %1148 = vmatpush2.bf16.msra.mxu0 %v847
  %1149 = vmatprep.subr.bf16.mxu0 %v846
  %1150 = vmatpush2.bf16.msra.mxu0 %v845
  %1151 = vmatprep.subr.bf16.mxu0 %v844
  %1152 = vmatpush2.bf16.msra.mxu0 %v843
  %1153 = vmatprep.subr.bf16.mxu0 %v842
  %1154 = vmatpush2.bf16.msra.mxu0 %v841
  %1155 = vmatprep.subr.bf16.mxu0 %v840
  %1156 = vmatpush2.bf16.msra.mxu0 %v839
  %1157 = vmatprep.subr.bf16.mxu0 %v838
  %1158 = vmatpush2.bf16.msra.mxu0 %v837
  %1159 = vmatprep.mubr.bf16.mxu0 %v388
  %1160 = vmatmul.mubr.bf16.gmra.mxu0 %v387
  %v1161 = vpop.f32.mrf.mxu0
  %v1162 = vadd.f32 %v1049, %v1161
  %v1163 = vpop.f32.mrf.mxu0
  %v1164 = vadd.f32 %v1051, %v1163
  %v1165 = vpop.f32.mrf.mxu0
  %v1166 = vadd.f32 %v1053, %v1165
  %v1167 = vpop.f32.mrf.mxu0
  %v1168 = vadd.f32 %v1055, %v1167
  %1169 = vmatprep.mubr.bf16.mxu0 %v395
  %1170 = vmatmul.mubr.bf16.gmra.mxu0 %v394
  %v1171 = vpop.f32.mrf.mxu0
  %v1172 = vadd.f32 %v1059, %v1171
  %v1173 = vpop.f32.mrf.mxu0
  %v1174 = vadd.f32 %v1061, %v1173
  %v1175 = vpop.f32.mrf.mxu0
  %v1176 = vadd.f32 %v1063, %v1175
  %v1177 = vpop.f32.mrf.mxu0
  %v1178 = vadd.f32 %v1065, %v1177
  %1179 = vmatprep.mubr.bf16.mxu0 %v402
  %1180 = vmatmul.mubr.bf16.gmra.mxu0 %v401
  %v1181 = vpop.f32.mrf.mxu0
  %v1182 = vadd.f32 %v1069, %v1181
  %v1183 = vpop.f32.mrf.mxu0
  %v1184 = vadd.f32 %v1071, %v1183
  %v1185 = vpop.f32.mrf.mxu0
  %v1186 = vadd.f32 %v1073, %v1185
  %v1187 = vpop.f32.mrf.mxu0
  %v1188 = vadd.f32 %v1075, %v1187
  %1189 = vmatprep.mubr.bf16.mxu0 %v409
  %1190 = vmatmul.mubr.bf16.gmra.mxu0 %v408
  %v1191 = vpop.f32.mrf.mxu0
  %v1192 = vadd.f32 %v1079, %v1191
  %v1193 = vpop.f32.mrf.mxu0
  %v1194 = vadd.f32 %v1081, %v1193
  %v1195 = vpop.f32.mrf.mxu0
  %v1196 = vadd.f32 %v1083, %v1195
  %v1197 = vpop.f32.mrf.mxu0
  %v1198 = vadd.f32 %v1085, %v1197
  %1199 = vmatprep.mubr.bf16.mxu0 %v416
  %1200 = vmatmul.mubr.bf16.gmra.mxu0 %v415
  %v1201 = vpop.f32.mrf.mxu0
  %v1202 = vadd.f32 %v1089, %v1201
  %v1203 = vpop.f32.mrf.mxu0
  %v1204 = vadd.f32 %v1091, %v1203
  %v1205 = vpop.f32.mrf.mxu0
  %v1206 = vadd.f32 %v1093, %v1205
  %v1207 = vpop.f32.mrf.mxu0
  %v1208 = vadd.f32 %v1095, %v1207
  %1209 = vmatprep.mubr.bf16.mxu0 %v423
  %1210 = vmatmul.mubr.bf16.gmra.mxu0 %v422
  %v1211 = vpop.f32.mrf.mxu0
  %v1212 = vadd.f32 %v1099, %v1211
  %v1213 = vpop.f32.mrf.mxu0
  %v1214 = vadd.f32 %v1101, %v1213
  %v1215 = vpop.f32.mrf.mxu0
  %v1216 = vadd.f32 %v1103, %v1215
  %v1217 = vpop.f32.mrf.mxu0
  %v1218 = vadd.f32 %v1105, %v1217
  %1219 = vmatprep.mubr.bf16.mxu0 %v430
  %1220 = vmatmul.mubr.bf16.gmra.mxu0 %v429
  %v1221 = vpop.f32.mrf.mxu0
  %v1222 = vadd.f32 %v1109, %v1221
  %v1223 = vpop.f32.mrf.mxu0
  %v1224 = vadd.f32 %v1111, %v1223
  %v1225 = vpop.f32.mrf.mxu0
  %v1226 = vadd.f32 %v1113, %v1225
  %v1227 = vpop.f32.mrf.mxu0
  %v1228 = vadd.f32 %v1115, %v1227
  %1229 = vmatprep.mubr.bf16.mxu0 %v437
  %1230 = vmatmul.mubr.bf16.gmra.mxu0 %v436
  %v1231 = vpop.f32.mrf.mxu0
  %v1232 = vadd.f32 %v1119, %v1231
  %v1233 = vpop.f32.mrf.mxu0
  %v1234 = vadd.f32 %v1121, %v1233
  %v1235 = vpop.f32.mrf.mxu0
  %v1236 = vadd.f32 %v1123, %v1235
  %v1237 = vpop.f32.mrf.mxu0
  %v1238 = vadd.f32 %v1125, %v1237
  %1239 = vdwg.mxu0
  %1240 = vmatprep.subr.bf16.mxu0 %v868
  %1241 = vmatpush1.bf16.msra.mxu0 %v867
  %1242 = vmatprep.subr.bf16.mxu0 %v866
  %1243 = vmatpush1.bf16.msra.mxu0 %v865
  %1244 = vmatprep.subr.bf16.mxu0 %v864
  %1245 = vmatpush1.bf16.msra.mxu0 %v863
  %1246 = vmatprep.subr.bf16.mxu0 %v862
  %1247 = vmatpush1.bf16.msra.mxu0 %v861
  %1248 = vmatprep.subr.bf16.mxu0 %v860
  %1249 = vmatpush1.bf16.msra.mxu0 %v859
  %1250 = vmatprep.subr.bf16.mxu0 %v858
  %1251 = vmatpush1.bf16.msra.mxu0 %v857
  %1252 = vmatprep.subr.bf16.mxu0 %v856
  %1253 = vmatpush1.bf16.msra.mxu0 %v855
  %1254 = vmatprep.subr.bf16.mxu0 %v854
  %1255 = vmatpush1.bf16.msra.mxu0 %v853
  %1256 = vmatprep.subr.bf16.mxu0 %v884
  %1257 = vmatpush2.bf16.msra.mxu0 %v883
  %1258 = vmatprep.subr.bf16.mxu0 %v882
  %1259 = vmatpush2.bf16.msra.mxu0 %v881
  %1260 = vmatprep.subr.bf16.mxu0 %v880
  %1261 = vmatpush2.bf16.msra.mxu0 %v879
  %1262 = vmatprep.subr.bf16.mxu0 %v878
  %1263 = vmatpush2.bf16.msra.mxu0 %v877
  %1264 = vmatprep.subr.bf16.mxu0 %v876
  %1265 = vmatpush2.bf16.msra.mxu0 %v875
  %1266 = vmatprep.subr.bf16.mxu0 %v874
  %1267 = vmatpush2.bf16.msra.mxu0 %v873
  %1268 = vmatprep.subr.bf16.mxu0 %v872
  %1269 = vmatpush2.bf16.msra.mxu0 %v871
  %1270 = vmatprep.subr.bf16.mxu0 %v870
  %1271 = vmatpush2.bf16.msra.mxu0 %v869
  %1272 = vmatprep.mubr.bf16.mxu0 %v390
  %1273 = vmatmul.mubr.bf16.gmra.mxu0 %v389
  %v1274 = vpop.f32.mrf.mxu0
  %v1275 = vadd.f32 %v1162, %v1274
  %v1276 = vpop.f32.mrf.mxu0
  %v1277 = vadd.f32 %v1164, %v1276
  %v1278 = vpop.f32.mrf.mxu0
  %v1279 = vadd.f32 %v1166, %v1278
  %v1280 = vpop.f32.mrf.mxu0
  %v1281 = vadd.f32 %v1168, %v1280
  %1282 = vmatprep.mubr.bf16.mxu0 %v397
  %1283 = vmatmul.mubr.bf16.gmra.mxu0 %v396
  %v1284 = vpop.f32.mrf.mxu0
  %v1285 = vadd.f32 %v1172, %v1284
  %v1286 = vpop.f32.mrf.mxu0
  %v1287 = vadd.f32 %v1174, %v1286
  %v1288 = vpop.f32.mrf.mxu0
  %v1289 = vadd.f32 %v1176, %v1288
  %v1290 = vpop.f32.mrf.mxu0
  %v1291 = vadd.f32 %v1178, %v1290
  %1292 = vmatprep.mubr.bf16.mxu0 %v404
  %1293 = vmatmul.mubr.bf16.gmra.mxu0 %v403
  %v1294 = vpop.f32.mrf.mxu0
  %v1295 = vadd.f32 %v1182, %v1294
  %v1296 = vpop.f32.mrf.mxu0
  %v1297 = vadd.f32 %v1184, %v1296
  %v1298 = vpop.f32.mrf.mxu0
  %v1299 = vadd.f32 %v1186, %v1298
  %v1300 = vpop.f32.mrf.mxu0
  %v1301 = vadd.f32 %v1188, %v1300
  %1302 = vmatprep.mubr.bf16.mxu0 %v411
  %1303 = vmatmul.mubr.bf16.gmra.mxu0 %v410
  %v1304 = vpop.f32.mrf.mxu0
  %v1305 = vadd.f32 %v1192, %v1304
  %v1306 = vpop.f32.mrf.mxu0
  %v1307 = vadd.f32 %v1194, %v1306
  %v1308 = vpop.f32.mrf.mxu0
  %v1309 = vadd.f32 %v1196, %v1308
  %v1310 = vpop.f32.mrf.mxu0
  %v1311 = vadd.f32 %v1198, %v1310
  %1312 = vmatprep.mubr.bf16.mxu0 %v418
  %1313 = vmatmul.mubr.bf16.gmra.mxu0 %v417
  %v1314 = vpop.f32.mrf.mxu0
  %v1315 = vadd.f32 %v1202, %v1314
  %v1316 = vpop.f32.mrf.mxu0
  %v1317 = vadd.f32 %v1204, %v1316
  %v1318 = vpop.f32.mrf.mxu0
  %v1319 = vadd.f32 %v1206, %v1318
  %v1320 = vpop.f32.mrf.mxu0
  %v1321 = vadd.f32 %v1208, %v1320
  %1322 = vmatprep.mubr.bf16.mxu0 %v425
  %1323 = vmatmul.mubr.bf16.gmra.mxu0 %v424
  %v1324 = vpop.f32.mrf.mxu0
  %v1325 = vadd.f32 %v1212, %v1324
  %v1326 = vpop.f32.mrf.mxu0
  %v1327 = vadd.f32 %v1214, %v1326
  %v1328 = vpop.f32.mrf.mxu0
  %v1329 = vadd.f32 %v1216, %v1328
  %v1330 = vpop.f32.mrf.mxu0
  %v1331 = vadd.f32 %v1218, %v1330
  %1332 = vmatprep.mubr.bf16.mxu0 %v432
  %1333 = vmatmul.mubr.bf16.gmra.mxu0 %v431
  %v1334 = vpop.f32.mrf.mxu0
  %v1335 = vadd.f32 %v1222, %v1334
  %v1336 = vpop.f32.mrf.mxu0
  %v1337 = vadd.f32 %v1224, %v1336
  %v1338 = vpop.f32.mrf.mxu0
  %v1339 = vadd.f32 %v1226, %v1338
  %v1340 = vpop.f32.mrf.mxu0
  %v1341 = vadd.f32 %v1228, %v1340
  %1342 = vmatprep.mubr.bf16.mxu0 %v439
  %1343 = vmatmul.mubr.bf16.gmra.mxu0 %v438
  %v1344 = vpop.f32.mrf.mxu0
  %v1345 = vadd.f32 %v1232, %v1344
  %v1346 = vpop.f32.mrf.mxu0
  %v1347 = vadd.f32 %v1234, %v1346
  %v1348 = vpop.f32.mrf.mxu0
  %v1349 = vadd.f32 %v1236, %v1348
  %v1350 = vpop.f32.mrf.mxu0
  %v1351 = vadd.f32 %v1238, %v1350
  %1352 = vdwg.mxu0
  %1353 = vmatprep.subr.bf16.mxu0 0
  %1354 = vmatpush1.bf16.msra.mxu0 0
  %1355 = vmatprep.subr.bf16.mxu0 0
  %1356 = vmatpush1.bf16.msra.mxu0 0
  %1357 = vmatprep.subr.bf16.mxu0 0
  %1358 = vmatpush1.bf16.msra.mxu0 0
  %1359 = vmatprep.subr.bf16.mxu0 0
  %1360 = vmatpush1.bf16.msra.mxu0 0
  %1361 = vmatprep.subr.bf16.mxu0 0
  %1362 = vmatpush1.bf16.msra.mxu0 0
  %1363 = vmatprep.subr.bf16.mxu0 0
  %1364 = vmatpush1.bf16.msra.mxu0 0
  %1365 = vmatprep.subr.bf16.mxu0 %v888
  %1366 = vmatpush1.bf16.msra.mxu0 %v887
  %1367 = vmatprep.subr.bf16.mxu0 %v886
  %1368 = vmatpush1.bf16.msra.mxu0 %v885
  %1369 = vmatprep.subr.bf16.mxu0 0
  %1370 = vmatpush2.bf16.msra.mxu0 0
  %1371 = vmatprep.subr.bf16.mxu0 0
  %1372 = vmatpush2.bf16.msra.mxu0 0
  %1373 = vmatprep.subr.bf16.mxu0 0
  %1374 = vmatpush2.bf16.msra.mxu0 0
  %1375 = vmatprep.subr.bf16.mxu0 0
  %1376 = vmatpush2.bf16.msra.mxu0 0
  %1377 = vmatprep.subr.bf16.mxu0 0
  %1378 = vmatpush2.bf16.msra.mxu0 0
  %1379 = vmatprep.subr.bf16.mxu0 0
  %1380 = vmatpush2.bf16.msra.mxu0 0
  %1381 = vmatprep.subr.bf16.mxu0 0
  %1382 = vmatpush2.bf16.msra.mxu0 0
  %1383 = vmatprep.subr.bf16.mxu0 0
  %1384 = vmatpush2.bf16.msra.mxu0 0
  %1385 = vmatprep.mubr.bf16.mxu0 0
  %1386 = vmatmul.mubr.bf16.gmra.mxu0 %v991
  %v1387 = vpop.f32.mrf.mxu0
  %v1388 = vadd.f32 %v1275, %v1387
  %v1389 = vpop.f32.mrf.mxu0
  %v1390 = vadd.f32 %v1277, %v1389
  %v1391 = vpop.f32.mrf.mxu0
  %v1392 = vadd.f32 %v1279, %v1391
  %v1393 = vpop.f32.mrf.mxu0
  %v1394 = vadd.f32 %v1281, %v1393
  %1395 = vmatprep.mubr.bf16.mxu0 0
  %1396 = vmatmul.mubr.bf16.gmra.mxu0 %v994
  %v1397 = vpop.f32.mrf.mxu0
  %v1398 = vadd.f32 %v1285, %v1397
  %v1399 = vpop.f32.mrf.mxu0
  %v1400 = vadd.f32 %v1287, %v1399
  %v1401 = vpop.f32.mrf.mxu0
  %v1402 = vadd.f32 %v1289, %v1401
  %v1403 = vpop.f32.mrf.mxu0
  %v1404 = vadd.f32 %v1291, %v1403
  %1405 = vmatprep.mubr.bf16.mxu0 0
  %1406 = vmatmul.mubr.bf16.gmra.mxu0 %v997
  %v1407 = vpop.f32.mrf.mxu0
  %v1408 = vadd.f32 %v1295, %v1407
  %v1409 = vpop.f32.mrf.mxu0
  %v1410 = vadd.f32 %v1297, %v1409
  %v1411 = vpop.f32.mrf.mxu0
  %v1412 = vadd.f32 %v1299, %v1411
  %v1413 = vpop.f32.mrf.mxu0
  %v1414 = vadd.f32 %v1301, %v1413
  %1415 = vmatprep.mubr.bf16.mxu0 0
  %1416 = vmatmul.mubr.bf16.gmra.mxu0 %v1000
  %v1417 = vpop.f32.mrf.mxu0
  %v1418 = vadd.f32 %v1305, %v1417
  %v1419 = vpop.f32.mrf.mxu0
  %v1420 = vadd.f32 %v1307, %v1419
  %v1421 = vpop.f32.mrf.mxu0
  %v1422 = vadd.f32 %v1309, %v1421
  %v1423 = vpop.f32.mrf.mxu0
  %v1424 = vadd.f32 %v1311, %v1423
  %1425 = vmatprep.mubr.bf16.mxu0 0
  %1426 = vmatmul.mubr.bf16.gmra.mxu0 %v1003
  %v1427 = vpop.f32.mrf.mxu0
  %v1428 = vadd.f32 %v1315, %v1427
  %v1429 = vpop.f32.mrf.mxu0
  %v1430 = vadd.f32 %v1317, %v1429
  %v1431 = vpop.f32.mrf.mxu0
  %v1432 = vadd.f32 %v1319, %v1431
  %v1433 = vpop.f32.mrf.mxu0
  %v1434 = vadd.f32 %v1321, %v1433
  %1435 = vmatprep.mubr.bf16.mxu0 0
  %1436 = vmatmul.mubr.bf16.gmra.mxu0 %v1006
  %v1437 = vpop.f32.mrf.mxu0
  %v1438 = vadd.f32 %v1325, %v1437
  %v1439 = vpop.f32.mrf.mxu0
  %v1440 = vadd.f32 %v1327, %v1439
  %v1441 = vpop.f32.mrf.mxu0
  %v1442 = vadd.f32 %v1329, %v1441
  %v1443 = vpop.f32.mrf.mxu0
  %v1444 = vadd.f32 %v1331, %v1443
  %1445 = vmatprep.mubr.bf16.mxu0 0
  %1446 = vmatmul.mubr.bf16.gmra.mxu0 %v1009
  %v1447 = vpop.f32.mrf.mxu0
  %v1448 = vadd.f32 %v1335, %v1447
  %v1449 = vpop.f32.mrf.mxu0
  %v1450 = vadd.f32 %v1337, %v1449
  %v1451 = vpop.f32.mrf.mxu0
  %v1452 = vadd.f32 %v1339, %v1451
  %v1453 = vpop.f32.mrf.mxu0
  %v1454 = vadd.f32 %v1341, %v1453
  %1455 = vmatprep.mubr.bf16.mxu0 0
  %1456 = vmatmul.mubr.bf16.gmra.mxu0 %v1012
  %v1457 = vpop.f32.mrf.mxu0
  %v1458 = vadd.f32 %v1345, %v1457
  %v1459 = vpop.f32.mrf.mxu0
  %v1460 = vadd.f32 %v1347, %v1459
  %v1461 = vpop.f32.mrf.mxu0
  %v1462 = vadd.f32 %v1349, %v1461
  %v1463 = vpop.f32.mrf.mxu0
  %v1464 = vadd.f32 %v1351, %v1463
  %1465 = vdwg.mxu0
  %v1466 = vmax.f32 %v1388, 0.0
  %v1467 = vmax.f32 %v1390, 0.0
  %v1468 = vmax.f32 %v1392, 0.0
  %v1469 = vmax.f32 %v1394, 0.0
  %v1470 = vmax.f32 %v1398, 0.0
  %v1471 = vmax.f32 %v1400, 0.0
  %v1472 = vmax.f32 %v1402, 0.0
  %v1473 = vmax.f32 %v1404, 0.0
  %v1474 = vmax.f32 %v1408, 0.0
  %v1475 = vmax.f32 %v1410, 0.0
  %v1476 = vmax.f32 %v1412, 0.0
  %v1477 = vmax.f32 %v1414, 0.0
  %v1478 = vmax.f32 %v1418, 0.0
  %v1479 = vmax.f32 %v1420, 0.0
  %v1480 = vmax.f32 %v1422, 0.0
  %v1481 = vmax.f32 %v1424, 0.0
  %v1482 = vmax.f32 %v1428, 0.0
  %v1483 = vmax.f32 %v1430, 0.0
  %v1484 = vmax.f32 %v1432, 0.0
  %v1485 = vmax.f32 %v1434, 0.0
  %v1486 = vmax.f32 %v1438, 0.0
  %v1487 = vmax.f32 %v1440, 0.0
  %v1488 = vmax.f32 %v1442, 0.0
  %v1489 = vmax.f32 %v1444, 0.0
  %v1490 = vmax.f32 %v1448, 0.0
  %v1491 = vmax.f32 %v1450, 0.0
  %v1492 = vmax.f32 %v1452, 0.0
  %v1493 = vmax.f32 %v1454, 0.0
  %v1494 = vmax.f32 %v1458, 0.0
  %v1495 = vmax.f32 %v1460, 0.0
  %v1496 = vmax.f32 %v1462, 0.0
  %v1497 = vmax.f32 %v1464, 0.0
  %v1498 = vpack.c.bf16 %v1468, %v1466
  %v1499 = vpack.c.bf16 %v1469, %v1467
  %v1500 = vpack.c.bf16 %v1472, %v1470
  %v1501 = vpack.c.bf16 %v1473, %v1471
  %v1502 = vpack.c.bf16 %v1476, %v1474
  %v1503 = vpack.c.bf16 %v1477, %v1475
  %v1504 = vpack.c.bf16 %v1480, %v1478
  %v1505 = vpack.c.bf16 %v1481, %v1479
  %v1506 = vpack.c.bf16 %v1484, %v1482
  %v1507 = vpack.c.bf16 %v1485, %v1483
  %v1508 = vpack.c.bf16 %v1488, %v1486
  %v1509 = vpack.c.bf16 %v1489, %v1487
  %v1510 = vpack.c.bf16 %v1492, %v1490
  %v1511 = vpack.c.bf16 %v1493, %v1491
  %v1512 = vpack.c.bf16 %v1496, %v1494
  %v1513 = vpack.c.bf16 %v1497, %v1495
  %v1514 = vld [vmem:[%s3] sm:$0xf]
  %v1515 = vld [vmem:[%s3 + $0x4] sm:$0xf]
  %v1516 = vld [vmem:[%s3 + $0x8] sm:$0xf]
  %v1517 = vld [vmem:[%s3 + $0xc] sm:$0xf]
  %v1518 = vld [vmem:[%s3 + $0x10] sm:$0xf]
  %v1519 = vld [vmem:[%s3 + $0x14] sm:$0xf]
  %v1520 = vld [vmem:[%s3 + $0x18] sm:$0xf]
  %v1521 = vld [vmem:[%s3 + $0x1c] sm:$0xf]
  %v1522 = vld [vmem:[%s3 + $0x20] sm:$0xf]
  %v1523 = vld [vmem:[%s3 + $0x24] sm:$0xf]
  %v1524 = vld [vmem:[%s3 + $0x28] sm:$0xf]
  %v1525 = vld [vmem:[%s3 + $0x2c] sm:$0xf]
  %v1526 = vld [vmem:[%s3 + $0x30] sm:$0xf]
  %v1527 = vld [vmem:[%s3 + $0x34] sm:$0xf]
  %v1528 = vld [vmem:[%s3 + $0x38] sm:$0xf]
  %v1529 = vld [vmem:[%s3 + $0x3c] sm:$0xf]
  %v1530 = vld [vmem:[%s3 + $0x40] sm:$0xf]
  %v1531 = vld [vmem:[%s3 + $0x44] sm:$0xf]
  %v1532 = vld [vmem:[%s3 + $0x48] sm:$0xf]
  %v1533 = vld [vmem:[%s3 + $0x4c] sm:$0xf]
  %v1534 = vld [vmem:[%s3 + $0x50] sm:$0xf]
  %v1535 = vld [vmem:[%s3 + $0x54] sm:$0xf]
  %v1536 = vld [vmem:[%s3 + $0x58] sm:$0xf]
  %v1537 = vld [vmem:[%s3 + $0x5c] sm:$0xf]
  %v1538 = vld [vmem:[%s3 + $0x60] sm:$0xf]
  %v1539 = vld [vmem:[%s3 + $0x64] sm:$0xf]
  %v1540 = vld [vmem:[%s3 + $0x68] sm:$0xf]
  %v1541 = vld [vmem:[%s3 + $0x6c] sm:$0xf]
  %v1542 = vld [vmem:[%s3 + $0x70] sm:$0xf]
  %v1543 = vld [vmem:[%s3 + $0x74] sm:$0xf]
  %v1544 = vld [vmem:[%s3 + $0x78] sm:$0xf]
  %v1545 = vld [vmem:[%s3 + $0x7c] sm:$0xf]
  %v1546 = vld [vmem:[%s4] sm:$0x1]
  %v1548 = vlaneseq
  %v1549 = vshrl.u32 %v1548, 7
  %v1550 = vsub.s32 0, %v1549
  %v1551 = vrot.slane %v1546, %v1550
  %v1585 = vunpack.c.l.b16 %v1514
  %v1586 = vunpack.c.l.b16 %v1515
  %v1587 = vunpack.c.l.b16 %v1516
  %v1588 = vunpack.c.l.b16 %v1517
  %v1589 = vunpack.c.l.b16 %v1518
  %v1590 = vunpack.c.l.b16 %v1519
  %v1591 = vunpack.c.l.b16 %v1520
  %v1592 = vunpack.c.l.b16 %v1521
  %v1593 = vunpack.c.l.b16 %v1522
  %v1594 = vunpack.c.l.b16 %v1523
  %v1595 = vunpack.c.l.b16 %v1524
  %v1596 = vunpack.c.l.b16 %v1525
  %v1597 = vunpack.c.l.b16 %v1526
  %v1598 = vunpack.c.l.b16 %v1527
  %v1599 = vunpack.c.l.b16 %v1528
  %v1600 = vunpack.c.l.b16 %v1529
  %v1601 = vunpack.c.l.b16 %v1530
  %v1602 = vunpack.c.l.b16 %v1531
  %v1603 = vunpack.c.l.b16 %v1532
  %v1604 = vunpack.c.l.b16 %v1533
  %v1605 = vunpack.c.l.b16 %v1534
  %v1606 = vunpack.c.l.b16 %v1535
  %v1607 = vunpack.c.l.b16 %v1536
  %v1608 = vunpack.c.l.b16 %v1537
  %v1609 = vunpack.c.l.b16 %v1538
  %v1610 = vunpack.c.l.b16 %v1539
  %v1611 = vunpack.c.l.b16 %v1540
  %v1612 = vunpack.c.l.b16 %v1541
  %v1613 = vunpack.c.l.b16 %v1542
  %v1614 = vunpack.c.l.b16 %v1543
  %v1615 = vunpack.c.l.b16 %v1544
  %v1616 = vunpack.c.l.b16 %v1545
  %v1617 = vpack.c.b16 %v1586, %v1585
  %v1618 = vpack.c.b16 %v1588, %v1587
  %v1619 = vpack.c.b16 %v1590, %v1589
  %v1620 = vpack.c.b16 %v1592, %v1591
  %v1621 = vpack.c.b16 %v1594, %v1593
  %v1622 = vpack.c.b16 %v1596, %v1595
  %v1623 = vpack.c.b16 %v1598, %v1597
  %v1624 = vpack.c.b16 %v1600, %v1599
  %v1625 = vpack.c.b16 %v1602, %v1601
  %v1626 = vpack.c.b16 %v1604, %v1603
  %v1627 = vpack.c.b16 %v1606, %v1605
  %v1628 = vpack.c.b16 %v1608, %v1607
  %v1629 = vpack.c.b16 %v1610, %v1609
  %v1630 = vpack.c.b16 %v1612, %v1611
  %v1631 = vpack.c.b16 %v1614, %v1613
  %v1632 = vpack.c.b16 %v1616, %v1615
  %1649 = vmatprep.subr.bf16.mxu0 0
  %1650 = vmatpush1.bf16.msra.mxu0 %v1624
  %1651 = vmatprep.subr.bf16.mxu0 0
  %1652 = vmatpush1.bf16.msra.mxu0 %v1623
  %1653 = vmatprep.subr.bf16.mxu0 0
  %1654 = vmatpush1.bf16.msra.mxu0 %v1622
  %1655 = vmatprep.subr.bf16.mxu0 0
  %1656 = vmatpush1.bf16.msra.mxu0 %v1621
  %1657 = vmatprep.subr.bf16.mxu0 0
  %1658 = vmatpush1.bf16.msra.mxu0 %v1620
  %1659 = vmatprep.subr.bf16.mxu0 0
  %1660 = vmatpush1.bf16.msra.mxu0 %v1619
  %1661 = vmatprep.subr.bf16.mxu0 0
  %1662 = vmatpush1.bf16.msra.mxu0 %v1618
  %1663 = vmatprep.subr.bf16.mxu0 0
  %1664 = vmatpush1.bf16.msra.mxu0 %v1617
  %1665 = vmatprep.subr.bf16.mxu0 0
  %1666 = vmatpush2.bf16.msra.mxu0 %v1632
  %1667 = vmatprep.subr.bf16.mxu0 0
  %1668 = vmatpush2.bf16.msra.mxu0 %v1631
  %1669 = vmatprep.subr.bf16.mxu0 0
  %1670 = vmatpush2.bf16.msra.mxu0 %v1630
  %1671 = vmatprep.subr.bf16.mxu0 0
  %1672 = vmatpush2.bf16.msra.mxu0 %v1629
  %1673 = vmatprep.subr.bf16.mxu0 0
  %1674 = vmatpush2.bf16.msra.mxu0 %v1628
  %1675 = vmatprep.subr.bf16.mxu0 0
  %1676 = vmatpush2.bf16.msra.mxu0 %v1627
  %1677 = vmatprep.subr.bf16.mxu0 0
  %1678 = vmatpush2.bf16.msra.mxu0 %v1626
  %1679 = vmatprep.subr.bf16.mxu0 0
  %1680 = vmatpush2.bf16.msra.mxu0 %v1625
  %1681 = vmatprep.mubr.bf16.mxu0 %v1499
  %1682 = vmatmul.mubr.bf16.gmra.mxu0 %v1498
  %v1683 = vpop.f32.mrf.mxu0
  %v1684 = vadd.f32 %v1551, %v1683
  %v1685 = vpop.f32.mrf.mxu0
  %v1686 = vpop.f32.mrf.mxu0
  %v1687 = vadd.f32 %v1551, %v1686
  %v1688 = vpop.f32.mrf.mxu0
  %1689 = vmatprep.mubr.bf16.mxu0 %v1501
  %1690 = vmatmul.mubr.bf16.gmra.mxu0 %v1500
  %v1691 = vpop.f32.mrf.mxu0
  %v1692 = vadd.f32 %v1551, %v1691
  %v1693 = vpop.f32.mrf.mxu0
  %v1694 = vpop.f32.mrf.mxu0
  %v1695 = vadd.f32 %v1551, %v1694
  %v1696 = vpop.f32.mrf.mxu0
  %1697 = vmatprep.mubr.bf16.mxu0 %v1503
  %1698 = vmatmul.mubr.bf16.gmra.mxu0 %v1502
  %v1699 = vpop.f32.mrf.mxu0
  %v1700 = vadd.f32 %v1551, %v1699
  %v1701 = vpop.f32.mrf.mxu0
  %v1702 = vpop.f32.mrf.mxu0
  %v1703 = vadd.f32 %v1551, %v1702
  %v1704 = vpop.f32.mrf.mxu0
  %1705 = vmatprep.mubr.bf16.mxu0 %v1505
  %1706 = vmatmul.mubr.bf16.gmra.mxu0 %v1504
  %v1707 = vpop.f32.mrf.mxu0
  %v1708 = vadd.f32 %v1551, %v1707
  %v1709 = vpop.f32.mrf.mxu0
  %v1710 = vpop.f32.mrf.mxu0
  %v1711 = vadd.f32 %v1551, %v1710
  %v1712 = vpop.f32.mrf.mxu0
  %1713 = vmatprep.mubr.bf16.mxu0 %v1507
  %1714 = vmatmul.mubr.bf16.gmra.mxu0 %v1506
  %v1715 = vpop.f32.mrf.mxu0
  %v1716 = vadd.f32 %v1551, %v1715
  %v1717 = vpop.f32.mrf.mxu0
  %v1718 = vpop.f32.mrf.mxu0
  %v1719 = vadd.f32 %v1551, %v1718
  %v1720 = vpop.f32.mrf.mxu0
  %1721 = vmatprep.mubr.bf16.mxu0 %v1509
  %1722 = vmatmul.mubr.bf16.gmra.mxu0 %v1508
  %v1723 = vpop.f32.mrf.mxu0
  %v1724 = vadd.f32 %v1551, %v1723
  %v1725 = vpop.f32.mrf.mxu0
  %v1726 = vpop.f32.mrf.mxu0
  %v1727 = vadd.f32 %v1551, %v1726
  %v1728 = vpop.f32.mrf.mxu0
  %1729 = vmatprep.mubr.bf16.mxu0 %v1511
  %1730 = vmatmul.mubr.bf16.gmra.mxu0 %v1510
  %v1731 = vpop.f32.mrf.mxu0
  %v1732 = vadd.f32 %v1551, %v1731
  %v1733 = vpop.f32.mrf.mxu0
  %v1734 = vpop.f32.mrf.mxu0
  %v1735 = vadd.f32 %v1551, %v1734
  %v1736 = vpop.f32.mrf.mxu0
  %1737 = vmatprep.mubr.bf16.mxu0 %v1513
  %1738 = vmatmul.mubr.bf16.gmra.mxu0 %v1512
  %v1739 = vpop.f32.mrf.mxu0
  %v1740 = vadd.f32 %v1551, %v1739
  %v1741 = vpop.f32.mrf.mxu0
  %v1742 = vpop.f32.mrf.mxu0
  %v1743 = vadd.f32 %v1551, %v1742
  %v1744 = vpop.f32.mrf.mxu0
  %1745 = vdwg.mxu0
  %v1746 = vmax.f32 %v1684, 0.0
  %v1747 = vmax.f32 %v1687, 0.0
  %v1748 = vmax.f32 %v1692, 0.0
  %v1749 = vmax.f32 %v1695, 0.0
  %v1750 = vmax.f32 %v1700, 0.0
  %v1751 = vmax.f32 %v1703, 0.0
  %v1752 = vmax.f32 %v1708, 0.0
  %v1753 = vmax.f32 %v1711, 0.0
  %v1754 = vmax.f32 %v1716, 0.0
  %v1755 = vmax.f32 %v1719, 0.0
  %v1756 = vmax.f32 %v1724, 0.0
  %v1757 = vmax.f32 %v1727, 0.0
  %v1758 = vmax.f32 %v1732, 0.0
  %v1759 = vmax.f32 %v1735, 0.0
  %v1760 = vmax.f32 %v1740, 0.0
  %v1761 = vmax.f32 %v1743, 0.0
  %v1762 = vpack.c.bf16 %v1746, %v1746
  %v1763 = vpack.c.bf16 %v1747, %v1747
  %v1764 = vpack.c.bf16 %v1748, %v1748
  %v1765 = vpack.c.bf16 %v1749, %v1749
  %v1766 = vpack.c.bf16 %v1750, %v1750
  %v1767 = vpack.c.bf16 %v1751, %v1751
  %v1768 = vpack.c.bf16 %v1752, %v1752
  %v1769 = vpack.c.bf16 %v1753, %v1753
  %v1770 = vpack.c.bf16 %v1754, %v1754
  %v1771 = vpack.c.bf16 %v1755, %v1755
  %v1772 = vpack.c.bf16 %v1756, %v1756
  %v1773 = vpack.c.bf16 %v1757, %v1757
  %v1774 = vpack.c.bf16 %v1758, %v1758
  %v1775 = vpack.c.bf16 %v1759, %v1759
  %v1776 = vpack.c.bf16 %v1760, %v1760
  %v1777 = vpack.c.bf16 %v1761, %v1761
  %v1778 = vld [vmem:[%s5] sm:$0xf]
  %v1779 = vld [vmem:[%s5 + $0x4] sm:$0xf]
  %v1780 = vld [vmem:[%s5 + $0x8] sm:$0xf]
  %v1781 = vld [vmem:[%s5 + $0xc] sm:$0xf]
  %v1782 = vld [vmem:[%s5 + $0x10] sm:$0xf]
  %v1783 = vld [vmem:[%s5 + $0x14] sm:$0xf]
  %v1784 = vld [vmem:[%s5 + $0x18] sm:$0xf]
  %v1785 = vld [vmem:[%s5 + $0x1c] sm:$0xf]
  %v1786 = vld [vmem:[%s5 + $0x20] sm:$0xf]
  %v1787 = vld [vmem:[%s5 + $0x24] sm:$0xf]
  %v1788 = vld [vmem:[%s5 + $0x28] sm:$0xf]
  %v1789 = vld [vmem:[%s5 + $0x2c] sm:$0xf]
  %v1790 = vld [vmem:[%s5 + $0x30] sm:$0xf]
  %v1791 = vld [vmem:[%s5 + $0x34] sm:$0xf]
  %v1792 = vld [vmem:[%s5 + $0x38] sm:$0xf]
  %v1793 = vld [vmem:[%s5 + $0x3c] sm:$0xf]
  %v1794 = vld [vmem:[%s5 + $0x40] sm:$0xf]
  %v1795 = vld [vmem:[%s5 + $0x44] sm:$0xf]
  %v1796 = vld [vmem:[%s5 + $0x48] sm:$0xf]
  %v1797 = vld [vmem:[%s5 + $0x4c] sm:$0xf]
  %v1798 = vld [vmem:[%s5 + $0x50] sm:$0xf]
  %v1799 = vld [vmem:[%s5 + $0x54] sm:$0xf]
  %v1800 = vld [vmem:[%s5 + $0x58] sm:$0xf]
  %v1801 = vld [vmem:[%s5 + $0x5c] sm:$0xf]
  %v1802 = vld [vmem:[%s5 + $0x60] sm:$0xf]
  %v1803 = vld [vmem:[%s5 + $0x64] sm:$0xf]
  %v1804 = vld [vmem:[%s5 + $0x68] sm:$0xf]
  %v1805 = vld [vmem:[%s5 + $0x6c] sm:$0xf]
  %v1806 = vld [vmem:[%s5 + $0x70] sm:$0xf]
  %v1807 = vld [vmem:[%s5 + $0x74] sm:$0xf]
  %v1808 = vld [vmem:[%s5 + $0x78] sm:$0xf]
  %v1809 = vld [vmem:[%s5 + $0x7c] sm:$0xf]
  %v1810 = vld [vmem:[%s5 + $0x80] sm:$0xf]
  %v1811 = vld [vmem:[%s5 + $0x84] sm:$0xf]
  %v1812 = vld [vmem:[%s5 + $0x88] sm:$0xf]
  %v1813 = vld [vmem:[%s5 + $0x8c] sm:$0xf]
  %v1814 = vld [vmem:[%s5 + $0x90] sm:$0xf]
  %v1815 = vld [vmem:[%s5 + $0x94] sm:$0xf]
  %v1816 = vld [vmem:[%s5 + $0x98] sm:$0xf]
  %v1817 = vld [vmem:[%s5 + $0x9c] sm:$0xf]
  %v1818 = vld [vmem:[%s5 + $0xa0] sm:$0xf]
  %v1819 = vld [vmem:[%s5 + $0xa4] sm:$0xf]
  %v1820 = vld [vmem:[%s5 + $0xa8] sm:$0xf]
  %v1821 = vld [vmem:[%s5 + $0xac] sm:$0xf]
  %v1822 = vld [vmem:[%s5 + $0xb0] sm:$0xf]
  %v1823 = vld [vmem:[%s5 + $0xb4] sm:$0xf]
  %v1824 = vld [vmem:[%s5 + $0xb8] sm:$0xf]
  %v1825 = vld [vmem:[%s5 + $0xbc] sm:$0xf]
  %v1826 = vld [vmem:[%s5 + $0xc0] sm:$0xf]
  %v1827 = vld [vmem:[%s5 + $0xc4] sm:$0xf]
  %v1828 = vld [vmem:[%s5 + $0xc8] sm:$0xf]
  %v1829 = vld [vmem:[%s5 + $0xcc] sm:$0xf]
  %v1830 = vld [vmem:[%s5 + $0xd0] sm:$0xf]
  %v1831 = vld [vmem:[%s5 + $0xd4] sm:$0xf]
  %v1832 = vld [vmem:[%s5 + $0xd8] sm:$0xf]
  %v1833 = vld [vmem:[%s5 + $0xdc] sm:$0xf]
  %v1834 = vld [vmem:[%s5 + $0xe0] sm:$0xf]
  %v1835 = vld [vmem:[%s5 + $0xe4] sm:$0xf]
  %v1836 = vld [vmem:[%s5 + $0xe8] sm:$0xf]
  %v1837 = vld [vmem:[%s5 + $0xec] sm:$0xf]
  %v1838 = vld [vmem:[%s5 + $0xf0] sm:$0xf]
  %v1839 = vld [vmem:[%s5 + $0xf4] sm:$0xf]
  %v1840 = vld [vmem:[%s5 + $0xf8] sm:$0xf]
  %v1841 = vld [vmem:[%s5 + $0xfc] sm:$0xf]
  %v1846 = vunpack.c.l.b16 %v1778
  %v1847 = vunpack.c.l.b16 %v1779
  %v1848 = vunpack.c.l.b16 %v1780
  %v1849 = vunpack.c.l.b16 %v1781
  %v1850 = vpack.c.b16 %v1847, %v1846
  %v1851 = vpack.c.b16 %v1849, %v1848
  %v1855 = vsel %vm989, %v1762, 0
  %1857 = vmatprep.subr.bf16.mxu0 0
  %1858 = vmatpush1.bf16.msra.mxu0 0
  %1859 = vmatprep.subr.bf16.mxu0 0
  %1860 = vmatpush1.bf16.msra.mxu0 0
  %1861 = vmatprep.subr.bf16.mxu0 0
  %1862 = vmatpush1.bf16.msra.mxu0 0
  %1863 = vmatprep.subr.bf16.mxu0 0
  %1864 = vmatpush1.bf16.msra.mxu0 0
  %1865 = vmatprep.subr.bf16.mxu0 0
  %1866 = vmatpush1.bf16.msra.mxu0 0
  %1867 = vmatprep.subr.bf16.mxu0 0
  %1868 = vmatpush1.bf16.msra.mxu0 0
  %1869 = vmatprep.subr.bf16.mxu0 0
  %1870 = vmatpush1.bf16.msra.mxu0 %v1851
  %1871 = vmatprep.subr.bf16.mxu0 0
  %1872 = vmatpush1.bf16.msra.mxu0 %v1850
  %1873 = vmatprep.subr.bf16.mxu0 0
  %1874 = vmatpush2.bf16.msra.mxu0 0
  %1875 = vmatprep.subr.bf16.mxu0 0
  %1876 = vmatpush2.bf16.msra.mxu0 0
  %1877 = vmatprep.subr.bf16.mxu0 0
  %1878 = vmatpush2.bf16.msra.mxu0 0
  %1879 = vmatprep.subr.bf16.mxu0 0
  %1880 = vmatpush2.bf16.msra.mxu0 0
  %1881 = vmatprep.subr.bf16.mxu0 0
  %1882 = vmatpush2.bf16.msra.mxu0 0
  %1883 = vmatprep.subr.bf16.mxu0 0
  %1884 = vmatpush2.bf16.msra.mxu0 0
  %1885 = vmatprep.subr.bf16.mxu0 0
  %1886 = vmatpush2.bf16.msra.mxu0 0
  %1887 = vmatprep.subr.bf16.mxu0 0
  %1888 = vmatpush2.bf16.msra.mxu0 0
  %1889 = vmatprep.mubr.bf16.mxu0 0
  %1890 = vmatmul.mubr.bf16.gmra.mxu0 %v1855
  %v1891 = vpop.f32.mrf.mxu0
  %v1892 = vadd.f32 0.0, %v1891
  %v1893 = vpop.f32.mrf.mxu0
  %v1894 = vpop.f32.mrf.mxu0
  %v1895 = vpop.f32.mrf.mxu0
  %1896 = vdwg.mxu0
  %v1901 = vunpack.c.l.b16 %v1782
  %v1902 = vunpack.c.l.b16 %v1783
  %v1903 = vunpack.c.l.b16 %v1784
  %v1904 = vunpack.c.l.b16 %v1785
  %v1905 = vpack.c.b16 %v1902, %v1901
  %v1906 = vpack.c.b16 %v1904, %v1903
  %v1910 = vsel %vm989, %v1763, 0
  %1912 = vmatprep.subr.bf16.mxu0 0
  %1913 = vmatpush1.bf16.msra.mxu0 0
  %1914 = vmatprep.subr.bf16.mxu0 0
  %1915 = vmatpush1.bf16.msra.mxu0 0
  %1916 = vmatprep.subr.bf16.mxu0 0
  %1917 = vmatpush1.bf16.msra.mxu0 0
  %1918 = vmatprep.subr.bf16.mxu0 0
  %1919 = vmatpush1.bf16.msra.mxu0 0
  %1920 = vmatprep.subr.bf16.mxu0 0
  %1921 = vmatpush1.bf16.msra.mxu0 0
  %1922 = vmatprep.subr.bf16.mxu0 0
  %1923 = vmatpush1.bf16.msra.mxu0 0
  %1924 = vmatprep.subr.bf16.mxu0 0
  %1925 = vmatpush1.bf16.msra.mxu0 %v1906
  %1926 = vmatprep.subr.bf16.mxu0 0
  %1927 = vmatpush1.bf16.msra.mxu0 %v1905
  %1928 = vmatprep.subr.bf16.mxu0 0
  %1929 = vmatpush2.bf16.msra.mxu0 0
  %1930 = vmatprep.subr.bf16.mxu0 0
  %1931 = vmatpush2.bf16.msra.mxu0 0
  %1932 = vmatprep.subr.bf16.mxu0 0
  %1933 = vmatpush2.bf16.msra.mxu0 0
  %1934 = vmatprep.subr.bf16.mxu0 0
  %1935 = vmatpush2.bf16.msra.mxu0 0
  %1936 = vmatprep.subr.bf16.mxu0 0
  %1937 = vmatpush2.bf16.msra.mxu0 0
  %1938 = vmatprep.subr.bf16.mxu0 0
  %1939 = vmatpush2.bf16.msra.mxu0 0
  %1940 = vmatprep.subr.bf16.mxu0 0
  %1941 = vmatpush2.bf16.msra.mxu0 0
  %1942 = vmatprep.subr.bf16.mxu0 0
  %1943 = vmatpush2.bf16.msra.mxu0 0
  %1944 = vmatprep.mubr.bf16.mxu0 0
  %1945 = vmatmul.mubr.bf16.gmra.mxu0 %v1910
  %v1946 = vpop.f32.mrf.mxu0
  %v1947 = vadd.f32 0.0, %v1946
  %v1948 = vpop.f32.mrf.mxu0
  %v1949 = vpop.f32.mrf.mxu0
  %v1950 = vpop.f32.mrf.mxu0
  %1951 = vdwg.mxu0
  %v1956 = vunpack.c.l.b16 %v1786
  %v1957 = vunpack.c.l.b16 %v1787
  %v1958 = vunpack.c.l.b16 %v1788
  %v1959 = vunpack.c.l.b16 %v1789
  %v1960 = vpack.c.b16 %v1957, %v1956
  %v1961 = vpack.c.b16 %v1959, %v1958
  %v1965 = vsel %vm989, %v1764, 0
  %1967 = vmatprep.subr.bf16.mxu0 0
  %1968 = vmatpush1.bf16.msra.mxu0 0
  %1969 = vmatprep.subr.bf16.mxu0 0
  %1970 = vmatpush1.bf16.msra.mxu0 0
  %1971 = vmatprep.subr.bf16.mxu0 0
  %1972 = vmatpush1.bf16.msra.mxu0 0
  %1973 = vmatprep.subr.bf16.mxu0 0
  %1974 = vmatpush1.bf16.msra.mxu0 0
  %1975 = vmatprep.subr.bf16.mxu0 0
  %1976 = vmatpush1.bf16.msra.mxu0 0
  %1977 = vmatprep.subr.bf16.mxu0 0
  %1978 = vmatpush1.bf16.msra.mxu0 0
  %1979 = vmatprep.subr.bf16.mxu0 0
  %1980 = vmatpush1.bf16.msra.mxu0 %v1961
  %1981 = vmatprep.subr.bf16.mxu0 0
  %1982 = vmatpush1.bf16.msra.mxu0 %v1960
  %1983 = vmatprep.subr.bf16.mxu0 0
  %1984 = vmatpush2.bf16.msra.mxu0 0
  %1985 = vmatprep.subr.bf16.mxu0 0
  %1986 = vmatpush2.bf16.msra.mxu0 0
  %1987 = vmatprep.subr.bf16.mxu0 0
  %1988 = vmatpush2.bf16.msra.mxu0 0
  %1989 = vmatprep.subr.bf16.mxu0 0
  %1990 = vmatpush2.bf16.msra.mxu0 0
  %1991 = vmatprep.subr.bf16.mxu0 0
  %1992 = vmatpush2.bf16.msra.mxu0 0
  %1993 = vmatprep.subr.bf16.mxu0 0
  %1994 = vmatpush2.bf16.msra.mxu0 0
  %1995 = vmatprep.subr.bf16.mxu0 0
  %1996 = vmatpush2.bf16.msra.mxu0 0
  %1997 = vmatprep.subr.bf16.mxu0 0
  %1998 = vmatpush2.bf16.msra.mxu0 0
  %1999 = vmatprep.mubr.bf16.mxu0 0
  %2000 = vmatmul.mubr.bf16.gmra.mxu0 %v1965
  %v2001 = vpop.f32.mrf.mxu0
  %v2002 = vadd.f32 0.0, %v2001
  %v2003 = vpop.f32.mrf.mxu0
  %v2004 = vpop.f32.mrf.mxu0
  %v2005 = vpop.f32.mrf.mxu0
  %2006 = vdwg.mxu0
  %v2011 = vunpack.c.l.b16 %v1790
  %v2012 = vunpack.c.l.b16 %v1791
  %v2013 = vunpack.c.l.b16 %v1792
  %v2014 = vunpack.c.l.b16 %v1793
  %v2015 = vpack.c.b16 %v2012, %v2011
  %v2016 = vpack.c.b16 %v2014, %v2013
  %v2020 = vsel %vm989, %v1765, 0
  %2022 = vmatprep.subr.bf16.mxu0 0
  %2023 = vmatpush1.bf16.msra.mxu0 0
  %2024 = vmatprep.subr.bf16.mxu0 0
  %2025 = vmatpush1.bf16.msra.mxu0 0
  %2026 = vmatprep.subr.bf16.mxu0 0
  %2027 = vmatpush1.bf16.msra.mxu0 0
  %2028 = vmatprep.subr.bf16.mxu0 0
  %2029 = vmatpush1.bf16.msra.mxu0 0
  %2030 = vmatprep.subr.bf16.mxu0 0
  %2031 = vmatpush1.bf16.msra.mxu0 0
  %2032 = vmatprep.subr.bf16.mxu0 0
  %2033 = vmatpush1.bf16.msra.mxu0 0
  %2034 = vmatprep.subr.bf16.mxu0 0
  %2035 = vmatpush1.bf16.msra.mxu0 %v2016
  %2036 = vmatprep.subr.bf16.mxu0 0
  %2037 = vmatpush1.bf16.msra.mxu0 %v2015
  %2038 = vmatprep.subr.bf16.mxu0 0
  %2039 = vmatpush2.bf16.msra.mxu0 0
  %2040 = vmatprep.subr.bf16.mxu0 0
  %2041 = vmatpush2.bf16.msra.mxu0 0
  %2042 = vmatprep.subr.bf16.mxu0 0
  %2043 = vmatpush2.bf16.msra.mxu0 0
  %2044 = vmatprep.subr.bf16.mxu0 0
  %2045 = vmatpush2.bf16.msra.mxu0 0
  %2046 = vmatprep.subr.bf16.mxu0 0
  %2047 = vmatpush2.bf16.msra.mxu0 0
  %2048 = vmatprep.subr.bf16.mxu0 0
  %2049 = vmatpush2.bf16.msra.mxu0 0
  %2050 = vmatprep.subr.bf16.mxu0 0
  %2051 = vmatpush2.bf16.msra.mxu0 0
  %2052 = vmatprep.subr.bf16.mxu0 0
  %2053 = vmatpush2.bf16.msra.mxu0 0
  %2054 = vmatprep.mubr.bf16.mxu0 0
  %2055 = vmatmul.mubr.bf16.gmra.mxu0 %v2020
  %v2056 = vpop.f32.mrf.mxu0
  %v2057 = vadd.f32 0.0, %v2056
  %v2058 = vpop.f32.mrf.mxu0
  %v2059 = vpop.f32.mrf.mxu0
  %v2060 = vpop.f32.mrf.mxu0
  %2061 = vdwg.mxu0
  %v2066 = vunpack.c.l.b16 %v1794
  %v2067 = vunpack.c.l.b16 %v1795
  %v2068 = vunpack.c.l.b16 %v1796
  %v2069 = vunpack.c.l.b16 %v1797
  %v2070 = vpack.c.b16 %v2067, %v2066
  %v2071 = vpack.c.b16 %v2069, %v2068
  %v2075 = vsel %vm989, %v1766, 0
  %2077 = vmatprep.subr.bf16.mxu0 0
  %2078 = vmatpush1.bf16.msra.mxu0 0
  %2079 = vmatprep.subr.bf16.mxu0 0
  %2080 = vmatpush1.bf16.msra.mxu0 0
  %2081 = vmatprep.subr.bf16.mxu0 0
  %2082 = vmatpush1.bf16.msra.mxu0 0
  %2083 = vmatprep.subr.bf16.mxu0 0
  %2084 = vmatpush1.bf16.msra.mxu0 0
  %2085 = vmatprep.subr.bf16.mxu0 0
  %2086 = vmatpush1.bf16.msra.mxu0 0
  %2087 = vmatprep.subr.bf16.mxu0 0
  %2088 = vmatpush1.bf16.msra.mxu0 0
  %2089 = vmatprep.subr.bf16.mxu0 0
  %2090 = vmatpush1.bf16.msra.mxu0 %v2071
  %2091 = vmatprep.subr.bf16.mxu0 0
  %2092 = vmatpush1.bf16.msra.mxu0 %v2070
  %2093 = vmatprep.subr.bf16.mxu0 0
  %2094 = vmatpush2.bf16.msra.mxu0 0
  %2095 = vmatprep.subr.bf16.mxu0 0
  %2096 = vmatpush2.bf16.msra.mxu0 0
  %2097 = vmatprep.subr.bf16.mxu0 0
  %2098 = vmatpush2.bf16.msra.mxu0 0
  %2099 = vmatprep.subr.bf16.mxu0 0
  %2100 = vmatpush2.bf16.msra.mxu0 0
  %2101 = vmatprep.subr.bf16.mxu0 0
  %2102 = vmatpush2.bf16.msra.mxu0 0
  %2103 = vmatprep.subr.bf16.mxu0 0
  %2104 = vmatpush2.bf16.msra.mxu0 0
  %2105 = vmatprep.subr.bf16.mxu0 0
  %2106 = vmatpush2.bf16.msra.mxu0 0
  %2107 = vmatprep.subr.bf16.mxu0 0
  %2108 = vmatpush2.bf16.msra.mxu0 0
  %2109 = vmatprep.mubr.bf16.mxu0 0
  %2110 = vmatmul.mubr.bf16.gmra.mxu0 %v2075
  %v2111 = vpop.f32.mrf.mxu0
  %v2112 = vadd.f32 0.0, %v2111
  %v2113 = vpop.f32.mrf.mxu0
  %v2114 = vpop.f32.mrf.mxu0
  %v2115 = vpop.f32.mrf.mxu0
  %2116 = vdwg.mxu0
  %v2121 = vunpack.c.l.b16 %v1798
  %v2122 = vunpack.c.l.b16 %v1799
  %v2123 = vunpack.c.l.b16 %v1800
  %v2124 = vunpack.c.l.b16 %v1801
  %v2125 = vpack.c.b16 %v2122, %v2121
  %v2126 = vpack.c.b16 %v2124, %v2123
  %v2130 = vsel %vm989, %v1767, 0
  %2132 = vmatprep.subr.bf16.mxu0 0
  %2133 = vmatpush1.bf16.msra.mxu0 0
  %2134 = vmatprep.subr.bf16.mxu0 0
  %2135 = vmatpush1.bf16.msra.mxu0 0
  %2136 = vmatprep.subr.bf16.mxu0 0
  %2137 = vmatpush1.bf16.msra.mxu0 0
  %2138 = vmatprep.subr.bf16.mxu0 0
  %2139 = vmatpush1.bf16.msra.mxu0 0
  %2140 = vmatprep.subr.bf16.mxu0 0
  %2141 = vmatpush1.bf16.msra.mxu0 0
  %2142 = vmatprep.subr.bf16.mxu0 0
  %2143 = vmatpush1.bf16.msra.mxu0 0
  %2144 = vmatprep.subr.bf16.mxu0 0
  %2145 = vmatpush1.bf16.msra.mxu0 %v2126
  %2146 = vmatprep.subr.bf16.mxu0 0
  %2147 = vmatpush1.bf16.msra.mxu0 %v2125
  %2148 = vmatprep.subr.bf16.mxu0 0
  %2149 = vmatpush2.bf16.msra.mxu0 0
  %2150 = vmatprep.subr.bf16.mxu0 0
  %2151 = vmatpush2.bf16.msra.mxu0 0
  %2152 = vmatprep.subr.bf16.mxu0 0
  %2153 = vmatpush2.bf16.msra.mxu0 0
  %2154 = vmatprep.subr.bf16.mxu0 0
  %2155 = vmatpush2.bf16.msra.mxu0 0
  %2156 = vmatprep.subr.bf16.mxu0 0
  %2157 = vmatpush2.bf16.msra.mxu0 0
  %2158 = vmatprep.subr.bf16.mxu0 0
  %2159 = vmatpush2.bf16.msra.mxu0 0
  %2160 = vmatprep.subr.bf16.mxu0 0
  %2161 = vmatpush2.bf16.msra.mxu0 0
  %2162 = vmatprep.subr.bf16.mxu0 0
  %2163 = vmatpush2.bf16.msra.mxu0 0
  %2164 = vmatprep.mubr.bf16.mxu0 0
  %2165 = vmatmul.mubr.bf16.gmra.mxu0 %v2130
  %v2166 = vpop.f32.mrf.mxu0
  %v2167 = vadd.f32 0.0, %v2166
  %v2168 = vpop.f32.mrf.mxu0
  %v2169 = vpop.f32.mrf.mxu0
  %v2170 = vpop.f32.mrf.mxu0
  %2171 = vdwg.mxu0
  %v2176 = vunpack.c.l.b16 %v1802
  %v2177 = vunpack.c.l.b16 %v1803
  %v2178 = vunpack.c.l.b16 %v1804
  %v2179 = vunpack.c.l.b16 %v1805
  %v2180 = vpack.c.b16 %v2177, %v2176
  %v2181 = vpack.c.b16 %v2179, %v2178
  %v2185 = vsel %vm989, %v1768, 0
  %2187 = vmatprep.subr.bf16.mxu0 0
  %2188 = vmatpush1.bf16.msra.mxu0 0
  %2189 = vmatprep.subr.bf16.mxu0 0
  %2190 = vmatpush1.bf16.msra.mxu0 0
  %2191 = vmatprep.subr.bf16.mxu0 0
  %2192 = vmatpush1.bf16.msra.mxu0 0
  %2193 = vmatprep.subr.bf16.mxu0 0
  %2194 = vmatpush1.bf16.msra.mxu0 0
  %2195 = vmatprep.subr.bf16.mxu0 0
  %2196 = vmatpush1.bf16.msra.mxu0 0
  %2197 = vmatprep.subr.bf16.mxu0 0
  %2198 = vmatpush1.bf16.msra.mxu0 0
  %2199 = vmatprep.subr.bf16.mxu0 0
  %2200 = vmatpush1.bf16.msra.mxu0 %v2181
  %2201 = vmatprep.subr.bf16.mxu0 0
  %2202 = vmatpush1.bf16.msra.mxu0 %v2180
  %2203 = vmatprep.subr.bf16.mxu0 0
  %2204 = vmatpush2.bf16.msra.mxu0 0
  %2205 = vmatprep.subr.bf16.mxu0 0
  %2206 = vmatpush2.bf16.msra.mxu0 0
  %2207 = vmatprep.subr.bf16.mxu0 0
  %2208 = vmatpush2.bf16.msra.mxu0 0
  %2209 = vmatprep.subr.bf16.mxu0 0
  %2210 = vmatpush2.bf16.msra.mxu0 0
  %2211 = vmatprep.subr.bf16.mxu0 0
  %2212 = vmatpush2.bf16.msra.mxu0 0
  %2213 = vmatprep.subr.bf16.mxu0 0
  %2214 = vmatpush2.bf16.msra.mxu0 0
  %2215 = vmatprep.subr.bf16.mxu0 0
  %2216 = vmatpush2.bf16.msra.mxu0 0
  %2217 = vmatprep.subr.bf16.mxu0 0
  %2218 = vmatpush2.bf16.msra.mxu0 0
  %2219 = vmatprep.mubr.bf16.mxu0 0
  %2220 = vmatmul.mubr.bf16.gmra.mxu0 %v2185
  %v2221 = vpop.f32.mrf.mxu0
  %v2222 = vadd.f32 0.0, %v2221
  %v2223 = vpop.f32.mrf.mxu0
  %v2224 = vpop.f32.mrf.mxu0
  %v2225 = vpop.f32.mrf.mxu0
  %2226 = vdwg.mxu0
  %v2231 = vunpack.c.l.b16 %v1806
  %v2232 = vunpack.c.l.b16 %v1807
  %v2233 = vunpack.c.l.b16 %v1808
  %v2234 = vunpack.c.l.b16 %v1809
  %v2235 = vpack.c.b16 %v2232, %v2231
  %v2236 = vpack.c.b16 %v2234, %v2233
  %v2240 = vsel %vm989, %v1769, 0
  %2242 = vmatprep.subr.bf16.mxu0 0
  %2243 = vmatpush1.bf16.msra.mxu0 0
  %2244 = vmatprep.subr.bf16.mxu0 0
  %2245 = vmatpush1.bf16.msra.mxu0 0
  %2246 = vmatprep.subr.bf16.mxu0 0
  %2247 = vmatpush1.bf16.msra.mxu0 0
  %2248 = vmatprep.subr.bf16.mxu0 0
  %2249 = vmatpush1.bf16.msra.mxu0 0
  %2250 = vmatprep.subr.bf16.mxu0 0
  %2251 = vmatpush1.bf16.msra.mxu0 0
  %2252 = vmatprep.subr.bf16.mxu0 0
  %2253 = vmatpush1.bf16.msra.mxu0 0
  %2254 = vmatprep.subr.bf16.mxu0 0
  %2255 = vmatpush1.bf16.msra.mxu0 %v2236
  %2256 = vmatprep.subr.bf16.mxu0 0
  %2257 = vmatpush1.bf16.msra.mxu0 %v2235
  %2258 = vmatprep.subr.bf16.mxu0 0
  %2259 = vmatpush2.bf16.msra.mxu0 0
  %2260 = vmatprep.subr.bf16.mxu0 0
  %2261 = vmatpush2.bf16.msra.mxu0 0
  %2262 = vmatprep.subr.bf16.mxu0 0
  %2263 = vmatpush2.bf16.msra.mxu0 0
  %2264 = vmatprep.subr.bf16.mxu0 0
  %2265 = vmatpush2.bf16.msra.mxu0 0
  %2266 = vmatprep.subr.bf16.mxu0 0
  %2267 = vmatpush2.bf16.msra.mxu0 0
  %2268 = vmatprep.subr.bf16.mxu0 0
  %2269 = vmatpush2.bf16.msra.mxu0 0
  %2270 = vmatprep.subr.bf16.mxu0 0
  %2271 = vmatpush2.bf16.msra.mxu0 0
  %2272 = vmatprep.subr.bf16.mxu0 0
  %2273 = vmatpush2.bf16.msra.mxu0 0
  %2274 = vmatprep.mubr.bf16.mxu0 0
  %2275 = vmatmul.mubr.bf16.gmra.mxu0 %v2240
  %v2276 = vpop.f32.mrf.mxu0
  %v2277 = vadd.f32 0.0, %v2276
  %v2278 = vpop.f32.mrf.mxu0
  %v2279 = vpop.f32.mrf.mxu0
  %v2280 = vpop.f32.mrf.mxu0
  %2281 = vdwg.mxu0
  %v2286 = vunpack.c.l.b16 %v1810
  %v2287 = vunpack.c.l.b16 %v1811
  %v2288 = vunpack.c.l.b16 %v1812
  %v2289 = vunpack.c.l.b16 %v1813
  %v2290 = vpack.c.b16 %v2287, %v2286
  %v2291 = vpack.c.b16 %v2289, %v2288
  %v2295 = vsel %vm989, %v1770, 0
  %2297 = vmatprep.subr.bf16.mxu0 0
  %2298 = vmatpush1.bf16.msra.mxu0 0
  %2299 = vmatprep.subr.bf16.mxu0 0
  %2300 = vmatpush1.bf16.msra.mxu0 0
  %2301 = vmatprep.subr.bf16.mxu0 0
  %2302 = vmatpush1.bf16.msra.mxu0 0
  %2303 = vmatprep.subr.bf16.mxu0 0
  %2304 = vmatpush1.bf16.msra.mxu0 0
  %2305 = vmatprep.subr.bf16.mxu0 0
  %2306 = vmatpush1.bf16.msra.mxu0 0
  %2307 = vmatprep.subr.bf16.mxu0 0
  %2308 = vmatpush1.bf16.msra.mxu0 0
  %2309 = vmatprep.subr.bf16.mxu0 0
  %2310 = vmatpush1.bf16.msra.mxu0 %v2291
  %2311 = vmatprep.subr.bf16.mxu0 0
  %2312 = vmatpush1.bf16.msra.mxu0 %v2290
  %2313 = vmatprep.subr.bf16.mxu0 0
  %2314 = vmatpush2.bf16.msra.mxu0 0
  %2315 = vmatprep.subr.bf16.mxu0 0
  %2316 = vmatpush2.bf16.msra.mxu0 0
  %2317 = vmatprep.subr.bf16.mxu0 0
  %2318 = vmatpush2.bf16.msra.mxu0 0
  %2319 = vmatprep.subr.bf16.mxu0 0
  %2320 = vmatpush2.bf16.msra.mxu0 0
  %2321 = vmatprep.subr.bf16.mxu0 0
  %2322 = vmatpush2.bf16.msra.mxu0 0
  %2323 = vmatprep.subr.bf16.mxu0 0
  %2324 = vmatpush2.bf16.msra.mxu0 0
  %2325 = vmatprep.subr.bf16.mxu0 0
  %2326 = vmatpush2.bf16.msra.mxu0 0
  %2327 = vmatprep.subr.bf16.mxu0 0
  %2328 = vmatpush2.bf16.msra.mxu0 0
  %2329 = vmatprep.mubr.bf16.mxu0 0
  %2330 = vmatmul.mubr.bf16.gmra.mxu0 %v2295
  %v2331 = vpop.f32.mrf.mxu0
  %v2332 = vadd.f32 0.0, %v2331
  %v2333 = vpop.f32.mrf.mxu0
  %v2334 = vpop.f32.mrf.mxu0
  %v2335 = vpop.f32.mrf.mxu0
  %2336 = vdwg.mxu0
  %v2341 = vunpack.c.l.b16 %v1814
  %v2342 = vunpack.c.l.b16 %v1815
  %v2343 = vunpack.c.l.b16 %v1816
  %v2344 = vunpack.c.l.b16 %v1817
  %v2345 = vpack.c.b16 %v2342, %v2341
  %v2346 = vpack.c.b16 %v2344, %v2343
  %v2350 = vsel %vm989, %v1771, 0
  %2352 = vmatprep.subr.bf16.mxu0 0
  %2353 = vmatpush1.bf16.msra.mxu0 0
  %2354 = vmatprep.subr.bf16.mxu0 0
  %2355 = vmatpush1.bf16.msra.mxu0 0
  %2356 = vmatprep.subr.bf16.mxu0 0
  %2357 = vmatpush1.bf16.msra.mxu0 0
  %2358 = vmatprep.subr.bf16.mxu0 0
  %2359 = vmatpush1.bf16.msra.mxu0 0
  %2360 = vmatprep.subr.bf16.mxu0 0
  %2361 = vmatpush1.bf16.msra.mxu0 0
  %2362 = vmatprep.subr.bf16.mxu0 0
  %2363 = vmatpush1.bf16.msra.mxu0 0
  %2364 = vmatprep.subr.bf16.mxu0 0
  %2365 = vmatpush1.bf16.msra.mxu0 %v2346
  %2366 = vmatprep.subr.bf16.mxu0 0
  %2367 = vmatpush1.bf16.msra.mxu0 %v2345
  %2368 = vmatprep.subr.bf16.mxu0 0
  %2369 = vmatpush2.bf16.msra.mxu0 0
  %2370 = vmatprep.subr.bf16.mxu0 0
  %2371 = vmatpush2.bf16.msra.mxu0 0
  %2372 = vmatprep.subr.bf16.mxu0 0
  %2373 = vmatpush2.bf16.msra.mxu0 0
  %2374 = vmatprep.subr.bf16.mxu0 0
  %2375 = vmatpush2.bf16.msra.mxu0 0
  %2376 = vmatprep.subr.bf16.mxu0 0
  %2377 = vmatpush2.bf16.msra.mxu0 0
  %2378 = vmatprep.subr.bf16.mxu0 0
  %2379 = vmatpush2.bf16.msra.mxu0 0
  %2380 = vmatprep.subr.bf16.mxu0 0
  %2381 = vmatpush2.bf16.msra.mxu0 0
  %2382 = vmatprep.subr.bf16.mxu0 0
  %2383 = vmatpush2.bf16.msra.mxu0 0
  %2384 = vmatprep.mubr.bf16.mxu0 0
  %2385 = vmatmul.mubr.bf16.gmra.mxu0 %v2350
  %v2386 = vpop.f32.mrf.mxu0
  %v2387 = vadd.f32 0.0, %v2386
  %v2388 = vpop.f32.mrf.mxu0
  %v2389 = vpop.f32.mrf.mxu0
  %v2390 = vpop.f32.mrf.mxu0
  %2391 = vdwg.mxu0
  %v2396 = vunpack.c.l.b16 %v1818
  %v2397 = vunpack.c.l.b16 %v1819
  %v2398 = vunpack.c.l.b16 %v1820
  %v2399 = vunpack.c.l.b16 %v1821
  %v2400 = vpack.c.b16 %v2397, %v2396
  %v2401 = vpack.c.b16 %v2399, %v2398
  %v2405 = vsel %vm989, %v1772, 0
  %2407 = vmatprep.subr.bf16.mxu0 0
  %2408 = vmatpush1.bf16.msra.mxu0 0
  %2409 = vmatprep.subr.bf16.mxu0 0
  %2410 = vmatpush1.bf16.msra.mxu0 0
  %2411 = vmatprep.subr.bf16.mxu0 0
  %2412 = vmatpush1.bf16.msra.mxu0 0
  %2413 = vmatprep.subr.bf16.mxu0 0
  %2414 = vmatpush1.bf16.msra.mxu0 0
  %2415 = vmatprep.subr.bf16.mxu0 0
  %2416 = vmatpush1.bf16.msra.mxu0 0
  %2417 = vmatprep.subr.bf16.mxu0 0
  %2418 = vmatpush1.bf16.msra.mxu0 0
  %2419 = vmatprep.subr.bf16.mxu0 0
  %2420 = vmatpush1.bf16.msra.mxu0 %v2401
  %2421 = vmatprep.subr.bf16.mxu0 0
  %2422 = vmatpush1.bf16.msra.mxu0 %v2400
  %2423 = vmatprep.subr.bf16.mxu0 0
  %2424 = vmatpush2.bf16.msra.mxu0 0
  %2425 = vmatprep.subr.bf16.mxu0 0
  %2426 = vmatpush2.bf16.msra.mxu0 0
  %2427 = vmatprep.subr.bf16.mxu0 0
  %2428 = vmatpush2.bf16.msra.mxu0 0
  %2429 = vmatprep.subr.bf16.mxu0 0
  %2430 = vmatpush2.bf16.msra.mxu0 0
  %2431 = vmatprep.subr.bf16.mxu0 0
  %2432 = vmatpush2.bf16.msra.mxu0 0
  %2433 = vmatprep.subr.bf16.mxu0 0
  %2434 = vmatpush2.bf16.msra.mxu0 0
  %2435 = vmatprep.subr.bf16.mxu0 0
  %2436 = vmatpush2.bf16.msra.mxu0 0
  %2437 = vmatprep.subr.bf16.mxu0 0
  %2438 = vmatpush2.bf16.msra.mxu0 0
  %2439 = vmatprep.mubr.bf16.mxu0 0
  %2440 = vmatmul.mubr.bf16.gmra.mxu0 %v2405
  %v2441 = vpop.f32.mrf.mxu0
  %v2442 = vadd.f32 0.0, %v2441
  %v2443 = vpop.f32.mrf.mxu0
  %v2444 = vpop.f32.mrf.mxu0
  %v2445 = vpop.f32.mrf.mxu0
  %2446 = vdwg.mxu0
  %v2451 = vunpack.c.l.b16 %v1822
  %v2452 = vunpack.c.l.b16 %v1823
  %v2453 = vunpack.c.l.b16 %v1824
  %v2454 = vunpack.c.l.b16 %v1825
  %v2455 = vpack.c.b16 %v2452, %v2451
  %v2456 = vpack.c.b16 %v2454, %v2453
  %v2460 = vsel %vm989, %v1773, 0
  %2462 = vmatprep.subr.bf16.mxu0 0
  %2463 = vmatpush1.bf16.msra.mxu0 0
  %2464 = vmatprep.subr.bf16.mxu0 0
  %2465 = vmatpush1.bf16.msra.mxu0 0
  %2466 = vmatprep.subr.bf16.mxu0 0
  %2467 = vmatpush1.bf16.msra.mxu0 0
  %2468 = vmatprep.subr.bf16.mxu0 0
  %2469 = vmatpush1.bf16.msra.mxu0 0
  %2470 = vmatprep.subr.bf16.mxu0 0
  %2471 = vmatpush1.bf16.msra.mxu0 0
  %2472 = vmatprep.subr.bf16.mxu0 0
  %2473 = vmatpush1.bf16.msra.mxu0 0
  %2474 = vmatprep.subr.bf16.mxu0 0
  %2475 = vmatpush1.bf16.msra.mxu0 %v2456
  %2476 = vmatprep.subr.bf16.mxu0 0
  %2477 = vmatpush1.bf16.msra.mxu0 %v2455
  %2478 = vmatprep.subr.bf16.mxu0 0
  %2479 = vmatpush2.bf16.msra.mxu0 0
  %2480 = vmatprep.subr.bf16.mxu0 0
  %2481 = vmatpush2.bf16.msra.mxu0 0
  %2482 = vmatprep.subr.bf16.mxu0 0
  %2483 = vmatpush2.bf16.msra.mxu0 0
  %2484 = vmatprep.subr.bf16.mxu0 0
  %2485 = vmatpush2.bf16.msra.mxu0 0
  %2486 = vmatprep.subr.bf16.mxu0 0
  %2487 = vmatpush2.bf16.msra.mxu0 0
  %2488 = vmatprep.subr.bf16.mxu0 0
  %2489 = vmatpush2.bf16.msra.mxu0 0
  %2490 = vmatprep.subr.bf16.mxu0 0
  %2491 = vmatpush2.bf16.msra.mxu0 0
  %2492 = vmatprep.subr.bf16.mxu0 0
  %2493 = vmatpush2.bf16.msra.mxu0 0
  %2494 = vmatprep.mubr.bf16.mxu0 0
  %2495 = vmatmul.mubr.bf16.gmra.mxu0 %v2460
  %v2496 = vpop.f32.mrf.mxu0
  %v2497 = vadd.f32 0.0, %v2496
  %v2498 = vpop.f32.mrf.mxu0
  %v2499 = vpop.f32.mrf.mxu0
  %v2500 = vpop.f32.mrf.mxu0
  %2501 = vdwg.mxu0
  %v2506 = vunpack.c.l.b16 %v1826
  %v2507 = vunpack.c.l.b16 %v1827
  %v2508 = vunpack.c.l.b16 %v1828
  %v2509 = vunpack.c.l.b16 %v1829
  %v2510 = vpack.c.b16 %v2507, %v2506
  %v2511 = vpack.c.b16 %v2509, %v2508
  %v2515 = vsel %vm989, %v1774, 0
  %2517 = vmatprep.subr.bf16.mxu0 0
  %2518 = vmatpush1.bf16.msra.mxu0 0
  %2519 = vmatprep.subr.bf16.mxu0 0
  %2520 = vmatpush1.bf16.msra.mxu0 0
  %2521 = vmatprep.subr.bf16.mxu0 0
  %2522 = vmatpush1.bf16.msra.mxu0 0
  %2523 = vmatprep.subr.bf16.mxu0 0
  %2524 = vmatpush1.bf16.msra.mxu0 0
  %2525 = vmatprep.subr.bf16.mxu0 0
  %2526 = vmatpush1.bf16.msra.mxu0 0
  %2527 = vmatprep.subr.bf16.mxu0 0
  %2528 = vmatpush1.bf16.msra.mxu0 0
  %2529 = vmatprep.subr.bf16.mxu0 0
  %2530 = vmatpush1.bf16.msra.mxu0 %v2511
  %2531 = vmatprep.subr.bf16.mxu0 0
  %2532 = vmatpush1.bf16.msra.mxu0 %v2510
  %2533 = vmatprep.subr.bf16.mxu0 0
  %2534 = vmatpush2.bf16.msra.mxu0 0
  %2535 = vmatprep.subr.bf16.mxu0 0
  %2536 = vmatpush2.bf16.msra.mxu0 0
  %2537 = vmatprep.subr.bf16.mxu0 0
  %2538 = vmatpush2.bf16.msra.mxu0 0
  %2539 = vmatprep.subr.bf16.mxu0 0
  %2540 = vmatpush2.bf16.msra.mxu0 0
  %2541 = vmatprep.subr.bf16.mxu0 0
  %2542 = vmatpush2.bf16.msra.mxu0 0
  %2543 = vmatprep.subr.bf16.mxu0 0
  %2544 = vmatpush2.bf16.msra.mxu0 0
  %2545 = vmatprep.subr.bf16.mxu0 0
  %2546 = vmatpush2.bf16.msra.mxu0 0
  %2547 = vmatprep.subr.bf16.mxu0 0
  %2548 = vmatpush2.bf16.msra.mxu0 0
  %2549 = vmatprep.mubr.bf16.mxu0 0
  %2550 = vmatmul.mubr.bf16.gmra.mxu0 %v2515
  %v2551 = vpop.f32.mrf.mxu0
  %v2552 = vadd.f32 0.0, %v2551
  %v2553 = vpop.f32.mrf.mxu0
  %v2554 = vpop.f32.mrf.mxu0
  %v2555 = vpop.f32.mrf.mxu0
  %2556 = vdwg.mxu0
  %v2561 = vunpack.c.l.b16 %v1830
  %v2562 = vunpack.c.l.b16 %v1831
  %v2563 = vunpack.c.l.b16 %v1832
  %v2564 = vunpack.c.l.b16 %v1833
  %v2565 = vpack.c.b16 %v2562, %v2561
  %v2566 = vpack.c.b16 %v2564, %v2563
  %v2570 = vsel %vm989, %v1775, 0
  %2572 = vmatprep.subr.bf16.mxu0 0
  %2573 = vmatpush1.bf16.msra.mxu0 0
  %2574 = vmatprep.subr.bf16.mxu0 0
  %2575 = vmatpush1.bf16.msra.mxu0 0
  %2576 = vmatprep.subr.bf16.mxu0 0
  %2577 = vmatpush1.bf16.msra.mxu0 0
  %2578 = vmatprep.subr.bf16.mxu0 0
  %2579 = vmatpush1.bf16.msra.mxu0 0
  %2580 = vmatprep.subr.bf16.mxu0 0
  %2581 = vmatpush1.bf16.msra.mxu0 0
  %2582 = vmatprep.subr.bf16.mxu0 0
  %2583 = vmatpush1.bf16.msra.mxu0 0
  %2584 = vmatprep.subr.bf16.mxu0 0
  %2585 = vmatpush1.bf16.msra.mxu0 %v2566
  %2586 = vmatprep.subr.bf16.mxu0 0
  %2587 = vmatpush1.bf16.msra.mxu0 %v2565
  %2588 = vmatprep.subr.bf16.mxu0 0
  %2589 = vmatpush2.bf16.msra.mxu0 0
  %2590 = vmatprep.subr.bf16.mxu0 0
  %2591 = vmatpush2.bf16.msra.mxu0 0
  %2592 = vmatprep.subr.bf16.mxu0 0
  %2593 = vmatpush2.bf16.msra.mxu0 0
  %2594 = vmatprep.subr.bf16.mxu0 0
  %2595 = vmatpush2.bf16.msra.mxu0 0
  %2596 = vmatprep.subr.bf16.mxu0 0
  %2597 = vmatpush2.bf16.msra.mxu0 0
  %2598 = vmatprep.subr.bf16.mxu0 0
  %2599 = vmatpush2.bf16.msra.mxu0 0
  %2600 = vmatprep.subr.bf16.mxu0 0
  %2601 = vmatpush2.bf16.msra.mxu0 0
  %2602 = vmatprep.subr.bf16.mxu0 0
  %2603 = vmatpush2.bf16.msra.mxu0 0
  %2604 = vmatprep.mubr.bf16.mxu0 0
  %2605 = vmatmul.mubr.bf16.gmra.mxu0 %v2570
  %v2606 = vpop.f32.mrf.mxu0
  %v2607 = vadd.f32 0.0, %v2606
  %v2608 = vpop.f32.mrf.mxu0
  %v2609 = vpop.f32.mrf.mxu0
  %v2610 = vpop.f32.mrf.mxu0
  %2611 = vdwg.mxu0
  %v2616 = vunpack.c.l.b16 %v1834
  %v2617 = vunpack.c.l.b16 %v1835
  %v2618 = vunpack.c.l.b16 %v1836
  %v2619 = vunpack.c.l.b16 %v1837
  %v2620 = vpack.c.b16 %v2617, %v2616
  %v2621 = vpack.c.b16 %v2619, %v2618
  %v2625 = vsel %vm989, %v1776, 0
  %2627 = vmatprep.subr.bf16.mxu0 0
  %2628 = vmatpush1.bf16.msra.mxu0 0
  %2629 = vmatprep.subr.bf16.mxu0 0
  %2630 = vmatpush1.bf16.msra.mxu0 0
  %2631 = vmatprep.subr.bf16.mxu0 0
  %2632 = vmatpush1.bf16.msra.mxu0 0
  %2633 = vmatprep.subr.bf16.mxu0 0
  %2634 = vmatpush1.bf16.msra.mxu0 0
  %2635 = vmatprep.subr.bf16.mxu0 0
  %2636 = vmatpush1.bf16.msra.mxu0 0
  %2637 = vmatprep.subr.bf16.mxu0 0
  %2638 = vmatpush1.bf16.msra.mxu0 0
  %2639 = vmatprep.subr.bf16.mxu0 0
  %2640 = vmatpush1.bf16.msra.mxu0 %v2621
  %2641 = vmatprep.subr.bf16.mxu0 0
  %2642 = vmatpush1.bf16.msra.mxu0 %v2620
  %2643 = vmatprep.subr.bf16.mxu0 0
  %2644 = vmatpush2.bf16.msra.mxu0 0
  %2645 = vmatprep.subr.bf16.mxu0 0
  %2646 = vmatpush2.bf16.msra.mxu0 0
  %2647 = vmatprep.subr.bf16.mxu0 0
  %2648 = vmatpush2.bf16.msra.mxu0 0
  %2649 = vmatprep.subr.bf16.mxu0 0
  %2650 = vmatpush2.bf16.msra.mxu0 0
  %2651 = vmatprep.subr.bf16.mxu0 0
  %2652 = vmatpush2.bf16.msra.mxu0 0
  %2653 = vmatprep.subr.bf16.mxu0 0
  %2654 = vmatpush2.bf16.msra.mxu0 0
  %2655 = vmatprep.subr.bf16.mxu0 0
  %2656 = vmatpush2.bf16.msra.mxu0 0
  %2657 = vmatprep.subr.bf16.mxu0 0
  %2658 = vmatpush2.bf16.msra.mxu0 0
  %2659 = vmatprep.mubr.bf16.mxu0 0
  %2660 = vmatmul.mubr.bf16.gmra.mxu0 %v2625
  %v2661 = vpop.f32.mrf.mxu0
  %v2662 = vadd.f32 0.0, %v2661
  %v2663 = vpop.f32.mrf.mxu0
  %v2664 = vpop.f32.mrf.mxu0
  %v2665 = vpop.f32.mrf.mxu0
  %2666 = vdwg.mxu0
  %v2671 = vunpack.c.l.b16 %v1838
  %v2672 = vunpack.c.l.b16 %v1839
  %v2673 = vunpack.c.l.b16 %v1840
  %v2674 = vunpack.c.l.b16 %v1841
  %v2675 = vpack.c.b16 %v2672, %v2671
  %v2676 = vpack.c.b16 %v2674, %v2673
  %v2680 = vsel %vm989, %v1777, 0
  %2682 = vmatprep.subr.bf16.mxu0 0
  %2683 = vmatpush1.bf16.msra.mxu0 0
  %2684 = vmatprep.subr.bf16.mxu0 0
  %2685 = vmatpush1.bf16.msra.mxu0 0
  %2686 = vmatprep.subr.bf16.mxu0 0
  %2687 = vmatpush1.bf16.msra.mxu0 0
  %2688 = vmatprep.subr.bf16.mxu0 0
  %2689 = vmatpush1.bf16.msra.mxu0 0
  %2690 = vmatprep.subr.bf16.mxu0 0
  %2691 = vmatpush1.bf16.msra.mxu0 0
  %2692 = vmatprep.subr.bf16.mxu0 0
  %2693 = vmatpush1.bf16.msra.mxu0 0
  %2694 = vmatprep.subr.bf16.mxu0 0
  %2695 = vmatpush1.bf16.msra.mxu0 %v2676
  %2696 = vmatprep.subr.bf16.mxu0 0
  %2697 = vmatpush1.bf16.msra.mxu0 %v2675
  %2698 = vmatprep.subr.bf16.mxu0 0
  %2699 = vmatpush2.bf16.msra.mxu0 0
  %2700 = vmatprep.subr.bf16.mxu0 0
  %2701 = vmatpush2.bf16.msra.mxu0 0
  %2702 = vmatprep.subr.bf16.mxu0 0
  %2703 = vmatpush2.bf16.msra.mxu0 0
  %2704 = vmatprep.subr.bf16.mxu0 0
  %2705 = vmatpush2.bf16.msra.mxu0 0
  %2706 = vmatprep.subr.bf16.mxu0 0
  %2707 = vmatpush2.bf16.msra.mxu0 0
  %2708 = vmatprep.subr.bf16.mxu0 0
  %2709 = vmatpush2.bf16.msra.mxu0 0
  %2710 = vmatprep.subr.bf16.mxu0 0
  %2711 = vmatpush2.bf16.msra.mxu0 0
  %2712 = vmatprep.subr.bf16.mxu0 0
  %2713 = vmatpush2.bf16.msra.mxu0 0
  %2714 = vmatprep.mubr.bf16.mxu0 0
  %2715 = vmatmul.mubr.bf16.gmra.mxu0 %v2680
  %v2716 = vpop.f32.mrf.mxu0
  %v2717 = vadd.f32 0.0, %v2716
  %v2718 = vpop.f32.mrf.mxu0
  %v2719 = vpop.f32.mrf.mxu0
  %v2720 = vpop.f32.mrf.mxu0
  %2721 = vdwg.mxu0
  %v2722 = vadd.f32 %v1892, %v1947
  %v2723 = vadd.f32 %v2722, %v2002
  %v2724 = vadd.f32 %v2723, %v2057
  %v2725 = vadd.f32 %v2724, %v2112
  %v2726 = vadd.f32 %v2725, %v2167
  %v2727 = vadd.f32 %v2726, %v2222
  %v2728 = vadd.f32 %v2727, %v2277
  %v2729 = vadd.f32 %v2728, %v2332
  %v2730 = vadd.f32 %v2729, %v2387
  %v2731 = vadd.f32 %v2730, %v2442
  %v2732 = vadd.f32 %v2731, %v2497
  %v2733 = vadd.f32 %v2732, %v2552
  %v2734 = vadd.f32 %v2733, %v2607
  %v2735 = vadd.f32 %v2734, %v2662
  %v2736 = vadd.f32 %v2735, %v2717
  %v2737 = vld [vmem:[%s6] sm:$0x1]
  %v2739 = vlaneseq
  %v2740 = vshrl.u32 %v2739, 7
  %v2741 = vsub.s32 0, %v2740
  %v2742 = vrot.slane %v2737, %v2741
  %v2744 = vadd.f32 %v2736, %v2742
  %v2745 = vmax.f32 %v2744, 0.0
  %v2746 = vpack.c.bf16 %v2745, %v2745
  %v2747 = vld [vmem:[%s7] sm:$0xf]
  %v2748 = vld [vmem:[%s7 + $0x4] sm:$0xf]
  %v2749 = vld [vmem:[%s7 + $0x8] sm:$0xf]
  %v2750 = vld [vmem:[%s7 + $0xc] sm:$0xf]
  %v2751 = vld [vmem:[%s7 + $0x10] sm:$0xf]
  %v2752 = vld [vmem:[%s7 + $0x14] sm:$0xf]
  %v2753 = vld [vmem:[%s7 + $0x18] sm:$0xf]
  %v2754 = vld [vmem:[%s7 + $0x1c] sm:$0xf]
  %v2755 = vld [vmem:[%s7 + $0x20] sm:$0xf]
  %v2756 = vld [vmem:[%s7 + $0x24] sm:$0xf]
  %v2757 = vld [vmem:[%s7 + $0x28] sm:$0xf]
  %v2758 = vld [vmem:[%s7 + $0x2c] sm:$0xf]
  %v2759 = vld [vmem:[%s7 + $0x30] sm:$0xf]
  %v2760 = vld [vmem:[%s7 + $0x34] sm:$0xf]
  %v2761 = vld [vmem:[%s7 + $0x38] sm:$0xf]
  %v2762 = vld [vmem:[%s7 + $0x3c] sm:$0xf]
  %v2763 = vld [vmem:[%s8] sm:$0x1]
  %v2765 = vlaneseq
  %v2766 = vshrl.u32 %v2765, 7
  %v2767 = vsub.s32 0, %v2766
  %v2768 = vrot.slane %v2763, %v2767
  %v2786 = vunpack.c.l.b16 %v2747
  %v2787 = vunpack.c.l.b16 %v2748
  %v2788 = vunpack.c.l.b16 %v2749
  %v2789 = vunpack.c.l.b16 %v2750
  %v2790 = vunpack.c.l.b16 %v2751
  %v2791 = vunpack.c.l.b16 %v2752
  %v2792 = vunpack.c.l.b16 %v2753
  %v2793 = vunpack.c.l.b16 %v2754
  %v2794 = vunpack.c.l.b16 %v2755
  %v2795 = vunpack.c.l.b16 %v2756
  %v2796 = vunpack.c.l.b16 %v2757
  %v2797 = vunpack.c.l.b16 %v2758
  %v2798 = vunpack.c.l.b16 %v2759
  %v2799 = vunpack.c.l.b16 %v2760
  %v2800 = vunpack.c.l.b16 %v2761
  %v2801 = vunpack.c.l.b16 %v2762
  %v2802 = vpack.c.b16 %v2787, %v2786
  %v2803 = vpack.c.b16 %v2789, %v2788
  %v2804 = vpack.c.b16 %v2791, %v2790
  %v2805 = vpack.c.b16 %v2793, %v2792
  %v2806 = vpack.c.b16 %v2795, %v2794
  %v2807 = vpack.c.b16 %v2797, %v2796
  %v2808 = vpack.c.b16 %v2799, %v2798
  %v2809 = vpack.c.b16 %v2801, %v2800
  %2818 = vmatprep.subr.bf16.mxu0 0
  %2819 = vmatpush1.bf16.msra.mxu0 %v2809
  %2820 = vmatprep.subr.bf16.mxu0 0
  %2821 = vmatpush1.bf16.msra.mxu0 %v2808
  %2822 = vmatprep.subr.bf16.mxu0 0
  %2823 = vmatpush1.bf16.msra.mxu0 %v2807
  %2824 = vmatprep.subr.bf16.mxu0 0
  %2825 = vmatpush1.bf16.msra.mxu0 %v2806
  %2826 = vmatprep.subr.bf16.mxu0 0
  %2827 = vmatpush1.bf16.msra.mxu0 %v2805
  %2828 = vmatprep.subr.bf16.mxu0 0
  %2829 = vmatpush1.bf16.msra.mxu0 %v2804
  %2830 = vmatprep.subr.bf16.mxu0 0
  %2831 = vmatpush1.bf16.msra.mxu0 %v2803
  %2832 = vmatprep.subr.bf16.mxu0 0
  %2833 = vmatpush1.bf16.msra.mxu0 %v2802
  %2834 = vmatprep.subr.bf16.mxu0 0
  %2835 = vmatpush2.bf16.msra.mxu0 0
  %2836 = vmatprep.subr.bf16.mxu0 0
  %2837 = vmatpush2.bf16.msra.mxu0 0
  %2838 = vmatprep.subr.bf16.mxu0 0
  %2839 = vmatpush2.bf16.msra.mxu0 0
  %2840 = vmatprep.subr.bf16.mxu0 0
  %2841 = vmatpush2.bf16.msra.mxu0 0
  %2842 = vmatprep.subr.bf16.mxu0 0
  %2843 = vmatpush2.bf16.msra.mxu0 0
  %2844 = vmatprep.subr.bf16.mxu0 0
  %2845 = vmatpush2.bf16.msra.mxu0 0
  %2846 = vmatprep.subr.bf16.mxu0 0
  %2847 = vmatpush2.bf16.msra.mxu0 0
  %2848 = vmatprep.subr.bf16.mxu0 0
  %2849 = vmatpush2.bf16.msra.mxu0 0
  %2850 = vmatprep.mubr.bf16.mxu0 0
  %2851 = vmatmul.mubr.bf16.gmra.mxu0 %v2746
  %v2852 = vpop.f32.mrf.mxu0
  %v2853 = vadd.f32 %v2768, %v2852
  %v2854 = vpop.f32.mrf.mxu0
  %v2855 = vpop.f32.mrf.mxu0
  %v2856 = vpop.f32.mrf.mxu0
  %2857 = vdwg.mxu0
  %2858 = vst [vmem:[%s9] sm:$0xff] %v2853
  // Predicated region
  $region38: #{net_forward.1} parent=0 // pred_check
    _
  $region39: #{net_forward.1} parent=0 // pred_check_branch
    %2860 = sbr.rel (0) target = $region41
  $region40: #{net_forward.1} parent=0 // pred_region
    _
  $region41: #{net_forward.1} parent=0 // pred_fallthru
    _
  // Predicated region
  $region42: #{net_forward.1} parent=0 // pred_check
    _
  $region43: #{net_forward.1} parent=0 // pred_check_branch
    %2862 = sbr.rel (0) target = $region45
  $region44: #{net_forward.1} parent=0 // pred_region
    _
  $region45: #{net_forward.1} parent=0 // pred_fallthru
    _

</llo_original>
